<compile_context>
chip_gen: v7x
topology: tpu7x:2x2x1
jax: 0.10.0
libtpu: 0.0.40
codegen_flags: <defaults>
</compile_context>

<pallas_src>
import functools

import jax
import jax.numpy as jnp
from jax.experimental import pallas as pl
from jax.experimental.pallas import tpu as pltpu


def _temporal_block_kernel(x_ref, w1_ref, b1_ref, w2_ref, b2_ref, bd_ref,
                           o_ref, *, kernel_size, dilation, n_outputs):
    """One batch tile per grid step.

    x_ref  : (NB, Cin, L)          bf16, un-padded, PyTorch NCL layout
    w1_ref : ((K+1)*Cout, Cin)     bf16, K conv1 taps stacked + Wd appended
    b1_ref : (Cout, 1)             f32
    w2_ref : (K*Cout, Cout)        bf16, K conv2 taps stacked
    b2_ref : (Cout, 1)             f32
    bd_ref : (Cout, 1)             f32
    o_ref  : (NB, Cout, L)         f32 (lane-dense: L on lanes)
    """
    K = kernel_size
    Cout = n_outputs
    NB = x_ref.shape[0]
    L = x_ref.shape[2]

    def causal_shift(y, shift):
        # z[:, t] = y[:, t - shift] for t >= shift, else 0  (causal left-pad).
        if shift == 0:
            return y
        return jnp.concatenate(
            [jnp.zeros((y.shape[0], shift), y.dtype), y[:, :L - shift]], axis=1)

    for b in range(NB):  # NB is small & static -> unrolled
        xb = x_ref[b]                                            # (Cin, L) bf16

        # ---- conv1 taps + 1x1 residual conv: ONE MXU push -----------------
        y1 = jnp.dot(w1_ref[...], xb,
                     preferred_element_type=jnp.float32)         # ((K+1)*Cout, L)
        acc1 = jnp.zeros((Cout, L), jnp.float32)
        for k in range(K):
            shift = (K - 1 - k) * dilation
            acc1 = acc1 + causal_shift(y1[k * Cout:(k + 1) * Cout, :], shift)
        h1 = jnp.maximum(acc1 + b1_ref[...], 0.0).astype(xb.dtype)   # (Cout, L)
        res = y1[K * Cout:(K + 1) * Cout, :] + bd_ref[...]           # (Cout, L)

        # ---- conv2: ONE MXU push -------------------------------------------
        y2 = jnp.dot(w2_ref[...], h1,
                     preferred_element_type=jnp.float32)         # (K*Cout, L)
        acc2 = jnp.zeros((Cout, L), jnp.float32)
        for k in range(K):
            shift = (K - 1 - k) * dilation
            acc2 = acc2 + causal_shift(y2[k * Cout:(k + 1) * Cout, :], shift)
        h2 = jnp.maximum(acc2 + b2_ref[...], 0.0)

        # ---- residual add + final ReLU -------------------------------------
        o_ref[b] = jnp.maximum(h2 + res, 0.0).astype(o_ref.dtype)


def temporal_block(x_ncl, w1, b1, w2, b2, wd, bd, *, kernel_size, dilation,
                   batch_block=8):
    """TemporalBlock forward.

    x_ncl : (N, Cin, L)     PyTorch conv1d layout (kept as-is; L on lanes)
    w1    : (Cout, Cin, K)  effective (weight-normed) conv1 weight
    w2    : (Cout, Cout, K) effective (weight-normed) conv2 weight
    wd    : (Cout, Cin) or None (None => identity residual, n_in == n_out)
    Returns (N, Cout, L) float32.
    """
    N, Cin, L = x_ncl.shape
    Cout = w1.shape[0]
    K = kernel_size
    assert (K - 1) * dilation < L, "causal padding must be shorter than L"

    if wd is None:
        # PyTorch uses an identity residual when n_inputs == n_outputs.
        wd = jnp.eye(Cout, Cin, dtype=jnp.float32)
        bd = jnp.zeros((Cout,), jnp.float32)

    # bf16 operands (native MXU input dtype), f32 accumulation in the kernel.
    x_b = x_ncl.astype(jnp.bfloat16)
    w1cat = jnp.concatenate(
        [jnp.transpose(w1, (2, 0, 1)).reshape(K * Cout, Cin),
         wd.reshape(Cout, Cin)], axis=0).astype(jnp.bfloat16)    # ((K+1)*Cout, Cin)
    w2cat = jnp.transpose(w2, (2, 0, 1)).reshape(K * Cout, Cout).astype(jnp.bfloat16)

    b1c = b1.reshape(Cout, 1).astype(jnp.float32)
    b2c = b2.reshape(Cout, 1).astype(jnp.float32)
    bdc = bd.reshape(Cout, 1).astype(jnp.float32)

    # Coarse grid: NB batch elements per step (amortizes per-step overhead).
    NB = max(1, min(batch_block, N))
    while N % NB:
        NB -= 1

    kernel = functools.partial(_temporal_block_kernel, kernel_size=K,
                               dilation=dilation, n_outputs=Cout)

    return pl.pallas_call(
        kernel,
        out_shape=jax.ShapeDtypeStruct((N, Cout, L), jnp.float32),
        grid_spec=pltpu.PrefetchScalarGridSpec(
            num_scalar_prefetch=0,
            grid=(N // NB,),
            in_specs=[
                pl.BlockSpec((NB, Cin, L), lambda n: (n, 0, 0)),          # x
                pl.BlockSpec(((K + 1) * Cout, Cin), lambda n: (0, 0)),    # w1 taps + wd
                pl.BlockSpec((Cout, 1), lambda n: (0, 0)),                # b1
                pl.BlockSpec((K * Cout, Cout), lambda n: (0, 0)),         # w2 taps
                pl.BlockSpec((Cout, 1), lambda n: (0, 0)),                # b2
                pl.BlockSpec((Cout, 1), lambda n: (0, 0)),                # bd
            ],
            out_specs=pl.BlockSpec((NB, Cout, L), lambda n: (n, 0, 0)),
        ),
        compiler_params=pltpu.CompilerParams(
            dimension_semantics=("parallel",)),   # batch axis is independent
    )(x_b, w1cat, b1c, w2cat, b2c, bdc)


def _weight_norm(v, g):
    """PyTorch weight_norm with default dim=0: w[o] = g[o] * v[o] / ||v[o]||."""
    norm = jnp.sqrt(jnp.sum(v * v, axis=(1, 2), keepdims=True))
    return g.reshape(-1, 1, 1) * v / norm


def _reference(x, w1, b1, w2, b2, wd, bd, *, dilation, pad):
    """Pure-JAX reference in PyTorch (N, C, L) layout.

    Mirrors the kernel's precision policy: bf16 operands, f32 accumulation,
    h1 rounded to bf16 before conv2.
    """
    f32 = lambda a: a.astype(jnp.float32)

    def causal_conv(inp, w, b):      # inp:(N,Cin,L)  w:(Cout,Cin,K)
        N, Cin, L = inp.shape
        Cout, _, K = w.shape
        xp = jnp.pad(f32(inp), ((0, 0), (0, 0), (pad, 0)))
        out = jnp.zeros((N, Cout, L), jnp.float32)
        for k in range(K):
            out = out + jnp.einsum("ncl,oc->nol",
                                   xp[:, :, k * dilation:k * dilation + L],
                                   f32(w[:, :, k]))
        return out + f32(b).reshape(1, -1, 1)

    h1 = jnp.maximum(causal_conv(x, w1, b1), 0.0).astype(jnp.bfloat16)
    h2 = jnp.maximum(causal_conv(h1, w2, b2), 0.0)
    res = jnp.einsum("ncl,oc->nol", f32(x), f32(wd)) + f32(bd).reshape(1, -1, 1)
    return jnp.maximum(h2 + res, 0.0)


if __name__ == "__main__":
    # Module hyperparameters (small, consistent with a TCN TemporalBlock).
    n_inputs, n_outputs = 4, 8
    kernel_size, stride, dilation = 3, 1, 2
    padding = (kernel_size - 1) * dilation   # standard causal TCN padding
    batch, seq_len = 8, 128                  # L on lanes -> lane-dense output

    key = jax.random.PRNGKey(0)
    k_x, k_v1, k_g1, k_b1, k_v2, k_g2, k_b2, k_wd, k_bd = jax.random.split(key, 9)

    x = jax.random.normal(k_x, (batch, n_inputs, seq_len), jnp.float32)

    # conv1 (weight-normalized): v ~ N(0, 0.01), g > 0
    v1 = 0.01 * jax.random.normal(k_v1, (n_outputs, n_inputs, kernel_size), jnp.float32)
    g1 = 0.5 + jax.random.uniform(k_g1, (n_outputs,), jnp.float32)
    w1_eff = _weight_norm(v1, g1)                          # (Cout, Cin, K)
    b1 = 0.1 * jax.random.normal(k_b1, (n_outputs,), jnp.float32)

    # conv2 (weight-normalized)
    v2 = 0.01 * jax.random.normal(k_v2, (n_outputs, n_outputs, kernel_size), jnp.float32)
    g2 = 0.5 + jax.random.uniform(k_g2, (n_outputs,), jnp.float32)
    w2_eff = _weight_norm(v2, g2)                          # (Cout, Cout, K)
    b2 = 0.1 * jax.random.normal(k_b2, (n_outputs,), jnp.float32)

    # downsample 1x1 conv (exists because n_inputs != n_outputs)
    wd = 0.01 * jax.random.normal(k_wd, (n_outputs, n_inputs), jnp.float32)
    bd = 0.1 * jax.random.normal(k_bd, (n_outputs,), jnp.float32)

    # Quantize x / weights to bf16 once; kernel and reference consume the same
    # quantized operands, so the comparison only measures kernel arithmetic.
    xq = x.astype(jnp.bfloat16)
    w1q = w1_eff.astype(jnp.bfloat16)
    w2q = w2_eff.astype(jnp.bfloat16)
    wdq = wd.astype(jnp.bfloat16)

    out = temporal_block(xq, w1q, b1, w2q, b2, wdq, bd,
                         kernel_size=kernel_size, dilation=dilation,
                         batch_block=4)                    # grid = (batch // 4,)
    out = jax.block_until_ready(out)

    ref = _reference(xq, w1q, b1, w2q, b2, wdq, bd,
                     dilation=dilation, pad=padding)

    assert out.shape == (batch, n_outputs, seq_len)
    max_err = float(jnp.max(jnp.abs(out - ref)))
    assert jnp.allclose(out, ref, atol=2e-2, rtol=2e-2), max_err

    print("KERNEL_OK")
</pallas_src>

<mosaic_0001>
module attributes {stable_mosaic.version = 11 : i64} {
  func.func @_temporal_block_kernel(%arg0: i32, %arg1: memref<4x4x128xbf16, #tpu.memory_space<vmem>>, %arg2: memref<32x4xbf16, #tpu.memory_space<vmem>>, %arg3: memref<8x1xf32, #tpu.memory_space<vmem>>, %arg4: memref<24x8xbf16, #tpu.memory_space<vmem>>, %arg5: memref<8x1xf32, #tpu.memory_space<vmem>>, %arg6: memref<8x1xf32, #tpu.memory_space<vmem>>, %arg7: memref<4x8x128xf32, #tpu.memory_space<vmem>>) attributes {dimension_semantics = [#tpu.dimension_semantics<parallel>], iteration_bounds = array<i64: 2>, scalar_prefetch = 0 : i64, scratch_operands = 0 : i64, tpu.core_type = #tpu.core_type<tc>, window_params = [{transform_indices = @transform_0, window_bounds = array<i64: 4, 4, 128>}, {pipeline_mode = #tpu.pipeline_mode<synchronous>, transform_indices = @transform_1, window_bounds = array<i64: 32, 4>}, {pipeline_mode = #tpu.pipeline_mode<synchronous>, transform_indices = @transform_2, window_bounds = array<i64: 8, 1>}, {pipeline_mode = #tpu.pipeline_mode<synchronous>, transform_indices = @transform_3, window_bounds = array<i64: 24, 8>}, {pipeline_mode = #tpu.pipeline_mode<synchronous>, transform_indices = @transform_4, window_bounds = array<i64: 8, 1>}, {pipeline_mode = #tpu.pipeline_mode<synchronous>, transform_indices = @transform_5, window_bounds = array<i64: 8, 1>}, {transform_indices = @transform_6, window_bounds = array<i64: 4, 8, 128>}]} {
    %c0 = arith.constant 0 : index
    %c0_0 = arith.constant 0 : index
    %c0_1 = arith.constant 0 : index
    %0 = vector.load %arg1[%c0, %c0_0, %c0_1] : memref<4x4x128xbf16, #tpu.memory_space<vmem>>, vector<1x4x128xbf16>
    %1 = vector.shape_cast %0 : vector<1x4x128xbf16> to vector<4x128xbf16>
    %c0_2 = arith.constant 0 : index
    %c0_3 = arith.constant 0 : index
    %2 = vector.load %arg2[%c0_2, %c0_3] : memref<32x4xbf16, #tpu.memory_space<vmem>>, vector<32x4xbf16>
    %cst = arith.constant dense<0.000000e+00> : vector<32x128xf32>
    %3 = tpu.matmul %2, %1, %cst {dimension_numbers = #tpu.dot_dimension_numbers<[1], [0], [0], [1], [0, 0, 1, 1], [], []>} : vector<32x4xbf16>, vector<4x128xbf16>, vector<32x128xf32> -> vector<32x128xf32>
    %cst_4 = arith.constant 0.000000e+00 : f32
    %4 = vector.broadcast %cst_4 : f32 to vector<8x128xf32>
    %5 = vector.extract_strided_slice %3 {offsets = [0, 0], sizes = [8, 128], strides = [1, 1]} : vector<32x128xf32> to vector<8x128xf32>
    %cst_5 = arith.constant 0.000000e+00 : f32
    %6 = vector.broadcast %cst_5 : f32 to vector<8x4xf32>
    %7 = vector.extract_strided_slice %5 {offsets = [0, 0], sizes = [8, 124], strides = [1, 1]} : vector<8x128xf32> to vector<8x124xf32>
    %8 = tpu.concatenate %6, %7 in 1 : vector<8x4xf32>, vector<8x124xf32> -> vector<8x128xf32>
    %9 = arith.addf %4, %8 : vector<8x128xf32>
    %10 = vector.extract_strided_slice %3 {offsets = [8, 0], sizes = [8, 128], strides = [1, 1]} : vector<32x128xf32> to vector<8x128xf32>
    %cst_6 = arith.constant 0.000000e+00 : f32
    %11 = vector.broadcast %cst_6 : f32 to vector<8x2xf32>
    %12 = vector.extract_strided_slice %10 {offsets = [0, 0], sizes = [8, 126], strides = [1, 1]} : vector<8x128xf32> to vector<8x126xf32>
    %13 = tpu.concatenate %11, %12 in 1 : vector<8x2xf32>, vector<8x126xf32> -> vector<8x128xf32>
    %14 = arith.addf %9, %13 : vector<8x128xf32>
    %15 = vector.extract_strided_slice %3 {offsets = [16, 0], sizes = [8, 128], strides = [1, 1]} : vector<32x128xf32> to vector<8x128xf32>
    %16 = arith.addf %14, %15 : vector<8x128xf32>
    %c0_7 = arith.constant 0 : index
    %c0_8 = arith.constant 0 : index
    %17 = vector.load %arg3[%c0_7, %c0_8] : memref<8x1xf32, #tpu.memory_space<vmem>>, vector<8x1xf32>
    %18 = vector.broadcast %17 : vector<8x1xf32> to vector<8x128xf32>
    %19 = arith.addf %16, %18 : vector<8x128xf32>
    %cst_9 = arith.constant 0.000000e+00 : f32
    %20 = vector.broadcast %cst_9 : f32 to vector<8x128xf32>
    %21 = arith.maximumf %19, %20 : vector<8x128xf32>
    %22 = arith.truncf %21 : vector<8x128xf32> to vector<8x128xbf16>
    %23 = vector.extract_strided_slice %3 {offsets = [24, 0], sizes = [8, 128], strides = [1, 1]} : vector<32x128xf32> to vector<8x128xf32>
    %c0_10 = arith.constant 0 : index
    %c0_11 = arith.constant 0 : index
    %24 = vector.load %arg6[%c0_10, %c0_11] : memref<8x1xf32, #tpu.memory_space<vmem>>, vector<8x1xf32>
    %25 = vector.broadcast %24 : vector<8x1xf32> to vector<8x128xf32>
    %26 = arith.addf %23, %25 : vector<8x128xf32>
    %c0_12 = arith.constant 0 : index
    %c0_13 = arith.constant 0 : index
    %27 = vector.load %arg4[%c0_12, %c0_13] : memref<24x8xbf16, #tpu.memory_space<vmem>>, vector<24x8xbf16>
    %cst_14 = arith.constant dense<0.000000e+00> : vector<24x128xf32>
    %28 = tpu.matmul %27, %22, %cst_14 {dimension_numbers = #tpu.dot_dimension_numbers<[1], [0], [0], [1], [0, 0, 1, 1], [], []>} : vector<24x8xbf16>, vector<8x128xbf16>, vector<24x128xf32> -> vector<24x128xf32>
    %cst_15 = arith.constant 0.000000e+00 : f32
    %29 = vector.broadcast %cst_15 : f32 to vector<8x128xf32>
    %30 = vector.extract_strided_slice %28 {offsets = [0, 0], sizes = [8, 128], strides = [1, 1]} : vector<24x128xf32> to vector<8x128xf32>
    %cst_16 = arith.constant 0.000000e+00 : f32
    %31 = vector.broadcast %cst_16 : f32 to vector<8x4xf32>
    %32 = vector.extract_strided_slice %30 {offsets = [0, 0], sizes = [8, 124], strides = [1, 1]} : vector<8x128xf32> to vector<8x124xf32>
    %33 = tpu.concatenate %31, %32 in 1 : vector<8x4xf32>, vector<8x124xf32> -> vector<8x128xf32>
    %34 = arith.addf %29, %33 : vector<8x128xf32>
    %35 = vector.extract_strided_slice %28 {offsets = [8, 0], sizes = [8, 128], strides = [1, 1]} : vector<24x128xf32> to vector<8x128xf32>
    %cst_17 = arith.constant 0.000000e+00 : f32
    %36 = vector.broadcast %cst_17 : f32 to vector<8x2xf32>
    %37 = vector.extract_strided_slice %35 {offsets = [0, 0], sizes = [8, 126], strides = [1, 1]} : vector<8x128xf32> to vector<8x126xf32>
    %38 = tpu.concatenate %36, %37 in 1 : vector<8x2xf32>, vector<8x126xf32> -> vector<8x128xf32>
    %39 = arith.addf %34, %38 : vector<8x128xf32>
    %40 = vector.extract_strided_slice %28 {offsets = [16, 0], sizes = [8, 128], strides = [1, 1]} : vector<24x128xf32> to vector<8x128xf32>
    %41 = arith.addf %39, %40 : vector<8x128xf32>
    %c0_18 = arith.constant 0 : index
    %c0_19 = arith.constant 0 : index
    %42 = vector.load %arg5[%c0_18, %c0_19] : memref<8x1xf32, #tpu.memory_space<vmem>>, vector<8x1xf32>
    %43 = vector.broadcast %42 : vector<8x1xf32> to vector<8x128xf32>
    %44 = arith.addf %41, %43 : vector<8x128xf32>
    %cst_20 = arith.constant 0.000000e+00 : f32
    %45 = vector.broadcast %cst_20 : f32 to vector<8x128xf32>
    %46 = arith.maximumf %44, %45 : vector<8x128xf32>
    %47 = arith.addf %46, %26 : vector<8x128xf32>
    %cst_21 = arith.constant 0.000000e+00 : f32
    %48 = vector.broadcast %cst_21 : f32 to vector<8x128xf32>
    %49 = arith.maximumf %47, %48 : vector<8x128xf32>
    %c0_22 = arith.constant 0 : index
    %c0_23 = arith.constant 0 : index
    %c0_24 = arith.constant 0 : index
    %50 = vector.load %arg7[%c0_22, %c0_23, %c0_24] : memref<4x8x128xf32, #tpu.memory_space<vmem>>, vector<1x8x128xf32>
    %51 = vector.shape_cast %50 : vector<1x8x128xf32> to vector<8x128xf32>
    %52 = vector.shape_cast %49 : vector<8x128xf32> to vector<1x8x128xf32>
    tpu.vector_store %arg7[%c0_22, %c0_23, %c0_24], %52 {strides = array<i32>} : memref<4x8x128xf32, #tpu.memory_space<vmem>>, vector<1x8x128xf32>,
    %c1 = arith.constant 1 : index
    %c0_25 = arith.constant 0 : index
    %c0_26 = arith.constant 0 : index
    %53 = vector.load %arg1[%c1, %c0_25, %c0_26] : memref<4x4x128xbf16, #tpu.memory_space<vmem>>, vector<1x4x128xbf16>
    %54 = vector.shape_cast %53 : vector<1x4x128xbf16> to vector<4x128xbf16>
    %c0_27 = arith.constant 0 : index
    %c0_28 = arith.constant 0 : index
    %55 = vector.load %arg2[%c0_27, %c0_28] : memref<32x4xbf16, #tpu.memory_space<vmem>>, vector<32x4xbf16>
    %cst_29 = arith.constant dense<0.000000e+00> : vector<32x128xf32>
    %56 = tpu.matmul %55, %54, %cst_29 {dimension_numbers = #tpu.dot_dimension_numbers<[1], [0], [0], [1], [0, 0, 1, 1], [], []>} : vector<32x4xbf16>, vector<4x128xbf16>, vector<32x128xf32> -> vector<32x128xf32>
    %cst_30 = arith.constant 0.000000e+00 : f32
    %57 = vector.broadcast %cst_30 : f32 to vector<8x128xf32>
    %58 = vector.extract_strided_slice %56 {offsets = [0, 0], sizes = [8, 128], strides = [1, 1]} : vector<32x128xf32> to vector<8x128xf32>
    %cst_31 = arith.constant 0.000000e+00 : f32
    %59 = vector.broadcast %cst_31 : f32 to vector<8x4xf32>
    %60 = vector.extract_strided_slice %58 {offsets = [0, 0], sizes = [8, 124], strides = [1, 1]} : vector<8x128xf32> to vector<8x124xf32>
    %61 = tpu.concatenate %59, %60 in 1 : vector<8x4xf32>, vector<8x124xf32> -> vector<8x128xf32>
    %62 = arith.addf %57, %61 : vector<8x128xf32>
    %63 = vector.extract_strided_slice %56 {offsets = [8, 0], sizes = [8, 128], strides = [1, 1]} : vector<32x128xf32> to vector<8x128xf32>
    %cst_32 = arith.constant 0.000000e+00 : f32
    %64 = vector.broadcast %cst_32 : f32 to vector<8x2xf32>
    %65 = vector.extract_strided_slice %63 {offsets = [0, 0], sizes = [8, 126], strides = [1, 1]} : vector<8x128xf32> to vector<8x126xf32>
    %66 = tpu.concatenate %64, %65 in 1 : vector<8x2xf32>, vector<8x126xf32> -> vector<8x128xf32>
    %67 = arith.addf %62, %66 : vector<8x128xf32>
    %68 = vector.extract_strided_slice %56 {offsets = [16, 0], sizes = [8, 128], strides = [1, 1]} : vector<32x128xf32> to vector<8x128xf32>
    %69 = arith.addf %67, %68 : vector<8x128xf32>
    %c0_33 = arith.constant 0 : index
    %c0_34 = arith.constant 0 : index
    %70 = vector.load %arg3[%c0_33, %c0_34] : memref<8x1xf32, #tpu.memory_space<vmem>>, vector<8x1xf32>
    %71 = vector.broadcast %70 : vector<8x1xf32> to vector<8x128xf32>
    %72 = arith.addf %69, %71 : vector<8x128xf32>
    %cst_35 = arith.constant 0.000000e+00 : f32
    %73 = vector.broadcast %cst_35 : f32 to vector<8x128xf32>
    %74 = arith.maximumf %72, %73 : vector<8x128xf32>
    %75 = arith.truncf %74 : vector<8x128xf32> to vector<8x128xbf16>
    %76 = vector.extract_strided_slice %56 {offsets = [24, 0], sizes = [8, 128], strides = [1, 1]} : vector<32x128xf32> to vector<8x128xf32>
    %c0_36 = arith.constant 0 : index
    %c0_37 = arith.constant 0 : index
    %77 = vector.load %arg6[%c0_36, %c0_37] : memref<8x1xf32, #tpu.memory_space<vmem>>, vector<8x1xf32>
    %78 = vector.broadcast %77 : vector<8x1xf32> to vector<8x128xf32>
    %79 = arith.addf %76, %78 : vector<8x128xf32>
    %c0_38 = arith.constant 0 : index
    %c0_39 = arith.constant 0 : index
    %80 = vector.load %arg4[%c0_38, %c0_39] : memref<24x8xbf16, #tpu.memory_space<vmem>>, vector<24x8xbf16>
    %cst_40 = arith.constant dense<0.000000e+00> : vector<24x128xf32>
    %81 = tpu.matmul %80, %75, %cst_40 {dimension_numbers = #tpu.dot_dimension_numbers<[1], [0], [0], [1], [0, 0, 1, 1], [], []>} : vector<24x8xbf16>, vector<8x128xbf16>, vector<24x128xf32> -> vector<24x128xf32>
    %cst_41 = arith.constant 0.000000e+00 : f32
    %82 = vector.broadcast %cst_41 : f32 to vector<8x128xf32>
    %83 = vector.extract_strided_slice %81 {offsets = [0, 0], sizes = [8, 128], strides = [1, 1]} : vector<24x128xf32> to vector<8x128xf32>
    %cst_42 = arith.constant 0.000000e+00 : f32
    %84 = vector.broadcast %cst_42 : f32 to vector<8x4xf32>
    %85 = vector.extract_strided_slice %83 {offsets = [0, 0], sizes = [8, 124], strides = [1, 1]} : vector<8x128xf32> to vector<8x124xf32>
    %86 = tpu.concatenate %84, %85 in 1 : vector<8x4xf32>, vector<8x124xf32> -> vector<8x128xf32>
    %87 = arith.addf %82, %86 : vector<8x128xf32>
    %88 = vector.extract_strided_slice %81 {offsets = [8, 0], sizes = [8, 128], strides = [1, 1]} : vector<24x128xf32> to vector<8x128xf32>
    %cst_43 = arith.constant 0.000000e+00 : f32
    %89 = vector.broadcast %cst_43 : f32 to vector<8x2xf32>
    %90 = vector.extract_strided_slice %88 {offsets = [0, 0], sizes = [8, 126], strides = [1, 1]} : vector<8x128xf32> to vector<8x126xf32>
    %91 = tpu.concatenate %89, %90 in 1 : vector<8x2xf32>, vector<8x126xf32> -> vector<8x128xf32>
    %92 = arith.addf %87, %91 : vector<8x128xf32>
    %93 = vector.extract_strided_slice %81 {offsets = [16, 0], sizes = [8, 128], strides = [1, 1]} : vector<24x128xf32> to vector<8x128xf32>
    %94 = arith.addf %92, %93 : vector<8x128xf32>
    %c0_44 = arith.constant 0 : index
    %c0_45 = arith.constant 0 : index
    %95 = vector.load %arg5[%c0_44, %c0_45] : memref<8x1xf32, #tpu.memory_space<vmem>>, vector<8x1xf32>
    %96 = vector.broadcast %95 : vector<8x1xf32> to vector<8x128xf32>
    %97 = arith.addf %94, %96 : vector<8x128xf32>
    %cst_46 = arith.constant 0.000000e+00 : f32
    %98 = vector.broadcast %cst_46 : f32 to vector<8x128xf32>
    %99 = arith.maximumf %97, %98 : vector<8x128xf32>
    %100 = arith.addf %99, %79 : vector<8x128xf32>
    %cst_47 = arith.constant 0.000000e+00 : f32
    %101 = vector.broadcast %cst_47 : f32 to vector<8x128xf32>
    %102 = arith.maximumf %100, %101 : vector<8x128xf32>
    %c1_48 = arith.constant 1 : index
    %c0_49 = arith.constant 0 : index
    %c0_50 = arith.constant 0 : index
    %103 = vector.load %arg7[%c1_48, %c0_49, %c0_50] : memref<4x8x128xf32, #tpu.memory_space<vmem>>, vector<1x8x128xf32>
    %104 = vector.shape_cast %103 : vector<1x8x128xf32> to vector<8x128xf32>
    %105 = vector.shape_cast %102 : vector<8x128xf32> to vector<1x8x128xf32>
    tpu.vector_store %arg7[%c1_48, %c0_49, %c0_50], %105 {strides = array<i32>} : memref<4x8x128xf32, #tpu.memory_space<vmem>>, vector<1x8x128xf32>,
    %c2 = arith.constant 2 : index
    %c0_51 = arith.constant 0 : index
    %c0_52 = arith.constant 0 : index
    %106 = vector.load %arg1[%c2, %c0_51, %c0_52] : memref<4x4x128xbf16, #tpu.memory_space<vmem>>, vector<1x4x128xbf16>
    %107 = vector.shape_cast %106 : vector<1x4x128xbf16> to vector<4x128xbf16>
    %c0_53 = arith.constant 0 : index
    %c0_54 = arith.constant 0 : index
    %108 = vector.load %arg2[%c0_53, %c0_54] : memref<32x4xbf16, #tpu.memory_space<vmem>>, vector<32x4xbf16>
    %cst_55 = arith.constant dense<0.000000e+00> : vector<32x128xf32>
    %109 = tpu.matmul %108, %107, %cst_55 {dimension_numbers = #tpu.dot_dimension_numbers<[1], [0], [0], [1], [0, 0, 1, 1], [], []>} : vector<32x4xbf16>, vector<4x128xbf16>, vector<32x128xf32> -> vector<32x128xf32>
    %cst_56 = arith.constant 0.000000e+00 : f32
    %110 = vector.broadcast %cst_56 : f32 to vector<8x128xf32>
    %111 = vector.extract_strided_slice %109 {offsets = [0, 0], sizes = [8, 128], strides = [1, 1]} : vector<32x128xf32> to vector<8x128xf32>
    %cst_57 = arith.constant 0.000000e+00 : f32
    %112 = vector.broadcast %cst_57 : f32 to vector<8x4xf32>
    %113 = vector.extract_strided_slice %111 {offsets = [0, 0], sizes = [8, 124], strides = [1, 1]} : vector<8x128xf32> to vector<8x124xf32>
    %114 = tpu.concatenate %112, %113 in 1 : vector<8x4xf32>, vector<8x124xf32> -> vector<8x128xf32>
    %115 = arith.addf %110, %114 : vector<8x128xf32>
    %116 = vector.extract_strided_slice %109 {offsets = [8, 0], sizes = [8, 128], strides = [1, 1]} : vector<32x128xf32> to vector<8x128xf32>
    %cst_58 = arith.constant 0.000000e+00 : f32
    %117 = vector.broadcast %cst_58 : f32 to vector<8x2xf32>
    %118 = vector.extract_strided_slice %116 {offsets = [0, 0], sizes = [8, 126], strides = [1, 1]} : vector<8x128xf32> to vector<8x126xf32>
    %119 = tpu.concatenate %117, %118 in 1 : vector<8x2xf32>, vector<8x126xf32> -> vector<8x128xf32>
    %120 = arith.addf %115, %119 : vector<8x128xf32>
    %121 = vector.extract_strided_slice %109 {offsets = [16, 0], sizes = [8, 128], strides = [1, 1]} : vector<32x128xf32> to vector<8x128xf32>
    %122 = arith.addf %120, %121 : vector<8x128xf32>
    %c0_59 = arith.constant 0 : index
    %c0_60 = arith.constant 0 : index
    %123 = vector.load %arg3[%c0_59, %c0_60] : memref<8x1xf32, #tpu.memory_space<vmem>>, vector<8x1xf32>
    %124 = vector.broadcast %123 : vector<8x1xf32> to vector<8x128xf32>
    %125 = arith.addf %122, %124 : vector<8x128xf32>
    %cst_61 = arith.constant 0.000000e+00 : f32
    %126 = vector.broadcast %cst_61 : f32 to vector<8x128xf32>
    %127 = arith.maximumf %125, %126 : vector<8x128xf32>
    %128 = arith.truncf %127 : vector<8x128xf32> to vector<8x128xbf16>
    %129 = vector.extract_strided_slice %109 {offsets = [24, 0], sizes = [8, 128], strides = [1, 1]} : vector<32x128xf32> to vector<8x128xf32>
    %c0_62 = arith.constant 0 : index
    %c0_63 = arith.constant 0 : index
    %130 = vector.load %arg6[%c0_62, %c0_63] : memref<8x1xf32, #tpu.memory_space<vmem>>, vector<8x1xf32>
    %131 = vector.broadcast %130 : vector<8x1xf32> to vector<8x128xf32>
    %132 = arith.addf %129, %131 : vector<8x128xf32>
    %c0_64 = arith.constant 0 : index
    %c0_65 = arith.constant 0 : index
    %133 = vector.load %arg4[%c0_64, %c0_65] : memref<24x8xbf16, #tpu.memory_space<vmem>>, vector<24x8xbf16>
    %cst_66 = arith.constant dense<0.000000e+00> : vector<24x128xf32>
    %134 = tpu.matmul %133, %128, %cst_66 {dimension_numbers = #tpu.dot_dimension_numbers<[1], [0], [0], [1], [0, 0, 1, 1], [], []>} : vector<24x8xbf16>, vector<8x128xbf16>, vector<24x128xf32> -> vector<24x128xf32>
    %cst_67 = arith.constant 0.000000e+00 : f32
    %135 = vector.broadcast %cst_67 : f32 to vector<8x128xf32>
    %136 = vector.extract_strided_slice %134 {offsets = [0, 0], sizes = [8, 128], strides = [1, 1]} : vector<24x128xf32> to vector<8x128xf32>
    %cst_68 = arith.constant 0.000000e+00 : f32
    %137 = vector.broadcast %cst_68 : f32 to vector<8x4xf32>
    %138 = vector.extract_strided_slice %136 {offsets = [0, 0], sizes = [8, 124], strides = [1, 1]} : vector<8x128xf32> to vector<8x124xf32>
    %139 = tpu.concatenate %137, %138 in 1 : vector<8x4xf32>, vector<8x124xf32> -> vector<8x128xf32>
    %140 = arith.addf %135, %139 : vector<8x128xf32>
    %141 = vector.extract_strided_slice %134 {offsets = [8, 0], sizes = [8, 128], strides = [1, 1]} : vector<24x128xf32> to vector<8x128xf32>
    %cst_69 = arith.constant 0.000000e+00 : f32
    %142 = vector.broadcast %cst_69 : f32 to vector<8x2xf32>
    %143 = vector.extract_strided_slice %141 {offsets = [0, 0], sizes = [8, 126], strides = [1, 1]} : vector<8x128xf32> to vector<8x126xf32>
    %144 = tpu.concatenate %142, %143 in 1 : vector<8x2xf32>, vector<8x126xf32> -> vector<8x128xf32>
    %145 = arith.addf %140, %144 : vector<8x128xf32>
    %146 = vector.extract_strided_slice %134 {offsets = [16, 0], sizes = [8, 128], strides = [1, 1]} : vector<24x128xf32> to vector<8x128xf32>
    %147 = arith.addf %145, %146 : vector<8x128xf32>
    %c0_70 = arith.constant 0 : index
    %c0_71 = arith.constant 0 : index
    %148 = vector.load %arg5[%c0_70, %c0_71] : memref<8x1xf32, #tpu.memory_space<vmem>>, vector<8x1xf32>
    %149 = vector.broadcast %148 : vector<8x1xf32> to vector<8x128xf32>
    %150 = arith.addf %147, %149 : vector<8x128xf32>
    %cst_72 = arith.constant 0.000000e+00 : f32
    %151 = vector.broadcast %cst_72 : f32 to vector<8x128xf32>
    %152 = arith.maximumf %150, %151 : vector<8x128xf32>
    %153 = arith.addf %152, %132 : vector<8x128xf32>
    %cst_73 = arith.constant 0.000000e+00 : f32
    %154 = vector.broadcast %cst_73 : f32 to vector<8x128xf32>
    %155 = arith.maximumf %153, %154 : vector<8x128xf32>
    %c2_74 = arith.constant 2 : index
    %c0_75 = arith.constant 0 : index
    %c0_76 = arith.constant 0 : index
    %156 = vector.load %arg7[%c2_74, %c0_75, %c0_76] : memref<4x8x128xf32, #tpu.memory_space<vmem>>, vector<1x8x128xf32>
    %157 = vector.shape_cast %156 : vector<1x8x128xf32> to vector<8x128xf32>
    %158 = vector.shape_cast %155 : vector<8x128xf32> to vector<1x8x128xf32>
    tpu.vector_store %arg7[%c2_74, %c0_75, %c0_76], %158 {strides = array<i32>} : memref<4x8x128xf32, #tpu.memory_space<vmem>>, vector<1x8x128xf32>,
    %c3 = arith.constant 3 : index
    %c0_77 = arith.constant 0 : index
    %c0_78 = arith.constant 0 : index
    %159 = vector.load %arg1[%c3, %c0_77, %c0_78] : memref<4x4x128xbf16, #tpu.memory_space<vmem>>, vector<1x4x128xbf16>
    %160 = vector.shape_cast %159 : vector<1x4x128xbf16> to vector<4x128xbf16>
    %c0_79 = arith.constant 0 : index
    %c0_80 = arith.constant 0 : index
    %161 = vector.load %arg2[%c0_79, %c0_80] : memref<32x4xbf16, #tpu.memory_space<vmem>>, vector<32x4xbf16>
    %cst_81 = arith.constant dense<0.000000e+00> : vector<32x128xf32>
    %162 = tpu.matmul %161, %160, %cst_81 {dimension_numbers = #tpu.dot_dimension_numbers<[1], [0], [0], [1], [0, 0, 1, 1], [], []>} : vector<32x4xbf16>, vector<4x128xbf16>, vector<32x128xf32> -> vector<32x128xf32>
    %cst_82 = arith.constant 0.000000e+00 : f32
    %163 = vector.broadcast %cst_82 : f32 to vector<8x128xf32>
    %164 = vector.extract_strided_slice %162 {offsets = [0, 0], sizes = [8, 128], strides = [1, 1]} : vector<32x128xf32> to vector<8x128xf32>
    %cst_83 = arith.constant 0.000000e+00 : f32
    %165 = vector.broadcast %cst_83 : f32 to vector<8x4xf32>
    %166 = vector.extract_strided_slice %164 {offsets = [0, 0], sizes = [8, 124], strides = [1, 1]} : vector<8x128xf32> to vector<8x124xf32>
    %167 = tpu.concatenate %165, %166 in 1 : vector<8x4xf32>, vector<8x124xf32> -> vector<8x128xf32>
    %168 = arith.addf %163, %167 : vector<8x128xf32>
    %169 = vector.extract_strided_slice %162 {offsets = [8, 0], sizes = [8, 128], strides = [1, 1]} : vector<32x128xf32> to vector<8x128xf32>
    %cst_84 = arith.constant 0.000000e+00 : f32
    %170 = vector.broadcast %cst_84 : f32 to vector<8x2xf32>
    %171 = vector.extract_strided_slice %169 {offsets = [0, 0], sizes = [8, 126], strides = [1, 1]} : vector<8x128xf32> to vector<8x126xf32>
    %172 = tpu.concatenate %170, %171 in 1 : vector<8x2xf32>, vector<8x126xf32> -> vector<8x128xf32>
    %173 = arith.addf %168, %172 : vector<8x128xf32>
    %174 = vector.extract_strided_slice %162 {offsets = [16, 0], sizes = [8, 128], strides = [1, 1]} : vector<32x128xf32> to vector<8x128xf32>
    %175 = arith.addf %173, %174 : vector<8x128xf32>
    %c0_85 = arith.constant 0 : index
    %c0_86 = arith.constant 0 : index
    %176 = vector.load %arg3[%c0_85, %c0_86] : memref<8x1xf32, #tpu.memory_space<vmem>>, vector<8x1xf32>
    %177 = vector.broadcast %176 : vector<8x1xf32> to vector<8x128xf32>
    %178 = arith.addf %175, %177 : vector<8x128xf32>
    %cst_87 = arith.constant 0.000000e+00 : f32
    %179 = vector.broadcast %cst_87 : f32 to vector<8x128xf32>
    %180 = arith.maximumf %178, %179 : vector<8x128xf32>
    %181 = arith.truncf %180 : vector<8x128xf32> to vector<8x128xbf16>
    %182 = vector.extract_strided_slice %162 {offsets = [24, 0], sizes = [8, 128], strides = [1, 1]} : vector<32x128xf32> to vector<8x128xf32>
    %c0_88 = arith.constant 0 : index
    %c0_89 = arith.constant 0 : index
    %183 = vector.load %arg6[%c0_88, %c0_89] : memref<8x1xf32, #tpu.memory_space<vmem>>, vector<8x1xf32>
    %184 = vector.broadcast %183 : vector<8x1xf32> to vector<8x128xf32>
    %185 = arith.addf %182, %184 : vector<8x128xf32>
    %c0_90 = arith.constant 0 : index
    %c0_91 = arith.constant 0 : index
    %186 = vector.load %arg4[%c0_90, %c0_91] : memref<24x8xbf16, #tpu.memory_space<vmem>>, vector<24x8xbf16>
    %cst_92 = arith.constant dense<0.000000e+00> : vector<24x128xf32>
    %187 = tpu.matmul %186, %181, %cst_92 {dimension_numbers = #tpu.dot_dimension_numbers<[1], [0], [0], [1], [0, 0, 1, 1], [], []>} : vector<24x8xbf16>, vector<8x128xbf16>, vector<24x128xf32> -> vector<24x128xf32>
    %cst_93 = arith.constant 0.000000e+00 : f32
    %188 = vector.broadcast %cst_93 : f32 to vector<8x128xf32>
    %189 = vector.extract_strided_slice %187 {offsets = [0, 0], sizes = [8, 128], strides = [1, 1]} : vector<24x128xf32> to vector<8x128xf32>
    %cst_94 = arith.constant 0.000000e+00 : f32
    %190 = vector.broadcast %cst_94 : f32 to vector<8x4xf32>
    %191 = vector.extract_strided_slice %189 {offsets = [0, 0], sizes = [8, 124], strides = [1, 1]} : vector<8x128xf32> to vector<8x124xf32>
    %192 = tpu.concatenate %190, %191 in 1 : vector<8x4xf32>, vector<8x124xf32> -> vector<8x128xf32>
    %193 = arith.addf %188, %192 : vector<8x128xf32>
    %194 = vector.extract_strided_slice %187 {offsets = [8, 0], sizes = [8, 128], strides = [1, 1]} : vector<24x128xf32> to vector<8x128xf32>
    %cst_95 = arith.constant 0.000000e+00 : f32
    %195 = vector.broadcast %cst_95 : f32 to vector<8x2xf32>
    %196 = vector.extract_strided_slice %194 {offsets = [0, 0], sizes = [8, 126], strides = [1, 1]} : vector<8x128xf32> to vector<8x126xf32>
    %197 = tpu.concatenate %195, %196 in 1 : vector<8x2xf32>, vector<8x126xf32> -> vector<8x128xf32>
    %198 = arith.addf %193, %197 : vector<8x128xf32>
    %199 = vector.extract_strided_slice %187 {offsets = [16, 0], sizes = [8, 128], strides = [1, 1]} : vector<24x128xf32> to vector<8x128xf32>
    %200 = arith.addf %198, %199 : vector<8x128xf32>
    %c0_96 = arith.constant 0 : index
    %c0_97 = arith.constant 0 : index
    %201 = vector.load %arg5[%c0_96, %c0_97] : memref<8x1xf32, #tpu.memory_space<vmem>>, vector<8x1xf32>
    %202 = vector.broadcast %201 : vector<8x1xf32> to vector<8x128xf32>
    %203 = arith.addf %200, %202 : vector<8x128xf32>
    %cst_98 = arith.constant 0.000000e+00 : f32
    %204 = vector.broadcast %cst_98 : f32 to vector<8x128xf32>
    %205 = arith.maximumf %203, %204 : vector<8x128xf32>
    %206 = arith.addf %205, %185 : vector<8x128xf32>
    %cst_99 = arith.constant 0.000000e+00 : f32
    %207 = vector.broadcast %cst_99 : f32 to vector<8x128xf32>
    %208 = arith.maximumf %206, %207 : vector<8x128xf32>
    %c3_100 = arith.constant 3 : index
    %c0_101 = arith.constant 0 : index
    %c0_102 = arith.constant 0 : index
    %209 = vector.load %arg7[%c3_100, %c0_101, %c0_102] : memref<4x8x128xf32, #tpu.memory_space<vmem>>, vector<1x8x128xf32>
    %210 = vector.shape_cast %209 : vector<1x8x128xf32> to vector<8x128xf32>
    %211 = vector.shape_cast %208 : vector<8x128xf32> to vector<1x8x128xf32>
    tpu.vector_store %arg7[%c3_100, %c0_101, %c0_102], %211 {strides = array<i32>} : memref<4x8x128xf32, #tpu.memory_space<vmem>>, vector<1x8x128xf32>,
    return
  }
  func.func @transform_0(%arg0: i32) -> (i32, i32, i32) {
    %c0_i32 = arith.constant 0 : i32
    %c0_i32_0 = arith.constant 0 : i32
    %c0_i32_1 = arith.constant 0 : i32
    return %arg0, %c0_i32, %c0_i32_0 : i32, i32, i32
  }
  func.func @transform_1(%arg0: i32) -> (i32, i32) {
    %c0_i32 = arith.constant 0 : i32
    %c0_i32_0 = arith.constant 0 : i32
    %c0_i32_1 = arith.constant 0 : i32
    return %c0_i32, %c0_i32_0 : i32, i32
  }
  func.func @transform_2(%arg0: i32) -> (i32, i32) {
    %c0_i32 = arith.constant 0 : i32
    %c0_i32_0 = arith.constant 0 : i32
    %c0_i32_1 = arith.constant 0 : i32
    return %c0_i32, %c0_i32_0 : i32, i32
  }
  func.func @transform_3(%arg0: i32) -> (i32, i32) {
    %c0_i32 = arith.constant 0 : i32
    %c0_i32_0 = arith.constant 0 : i32
    %c0_i32_1 = arith.constant 0 : i32
    return %c0_i32, %c0_i32_0 : i32, i32
  }
  func.func @transform_4(%arg0: i32) -> (i32, i32) {
    %c0_i32 = arith.constant 0 : i32
    %c0_i32_0 = arith.constant 0 : i32
    %c0_i32_1 = arith.constant 0 : i32
    return %c0_i32, %c0_i32_0 : i32, i32
  }
  func.func @transform_5(%arg0: i32) -> (i32, i32) {
    %c0_i32 = arith.constant 0 : i32
    %c0_i32_0 = arith.constant 0 : i32
    %c0_i32_1 = arith.constant 0 : i32
    return %c0_i32, %c0_i32_0 : i32, i32
  }
  func.func @transform_6(%arg0: i32) -> (i32, i32, i32) {
    %c0_i32 = arith.constant 0 : i32
    %c0_i32_0 = arith.constant 0 : i32
    %c0_i32_1 = arith.constant 0 : i32
    return %arg0, %c0_i32, %c0_i32_0 : i32, i32, i32
  }
}

</mosaic_0001>

<llo_original>
// kernel: tpu_custom_call.1
$region0: #{tpu_custom_call.1}
  #allocation0 [shape = 'u32[]', space=smem, size = 0x4, offset = 0x4, fixed_abs, tag = 'smem constant byte address 0x4 - core index']
  #allocation1 [shape = 'u32[144,128]{1,0:T(1,128)}', space=vmem, size = 0x12000, scoped, tag = 'internal scratch']
  %s0 = inlined_call_operand.vmem [shape: bf16[8,4,128], index: 0, kind: input, shape index: {}]
  %s1 = inlined_call_operand.vmem [shape: bf16[32,4], index: 1, kind: input, shape index: {}]
  %s2 = inlined_call_operand.vmem [shape: f32[8,1], index: 2, kind: input, shape index: {}]
  %s3 = inlined_call_operand.vmem [shape: bf16[24,8], index: 3, kind: input, shape index: {}]
  %s4 = inlined_call_operand.vmem [shape: f32[8,1], index: 4, kind: input, shape index: {}]
  %s5 = inlined_call_operand.vmem [shape: f32[8,1], index: 5, kind: input, shape index: {}]
  %s6 = inlined_call_operand.hbm [shape: f32[8,8,128], index: 6, kind: output, shape index: {}]
  %s7 = sld [smem:[#allocation0]]
  $region57: #{tpu_custom_call.1} parent=0
    _
  %s9 = ssub.s32 1, %s7
  %s10 = scalar_select 0, %s9, %s7
  $region1: #{tpu_custom_call.1} parent=0
    #allocation2 [shape = 'u8[32768]{0}', space=vmem, size = 0x8000, scoped, tag = 'output window, operand 0']
    #allocation3 [shape = 's32[2]{0}', space=sflag, size = 0x8, scoped, tag = 'scoped memory for tpu_custom_call.1']
    %11 = vsyncpa [#allocation3], 0
    %s12 = scalar_lea.sflag [#allocation3], 1
    %13 = vsyncpa %s12, 0
    loop: start=0, step=1, limit=4
    $region2: #{tpu_custom_call.1} parent=1 // loop_pre_header
      _
    $region3: #{tpu_custom_call.1} parent=1 // loop_header
      %s15 = sphi 0, %s19
      %p16 = scmp.ge.s32.totalorder %s15, 4
      %s25 = sphi 0, %s27
      %s28 = sphi 0, %s25
      %s29 = sphi 0, %s28
      %s45 = sphi 0, %s29
      %s49 = sphi 0, %s49
      %s51 = sphi 0, %s49
      %s52 = sphi 0, %s51
      %s66 = sphi 0, %s52
      %s70 = sphi 0, %s70
      %s72 = sphi 0, %s70
      %s73 = sphi 0, %s72
      %s87 = sphi 0, %s73
      %s91 = sphi 0, %s91
      %s93 = sphi 0, %s91
      %s94 = sphi 0, %s93
      %s108 = sphi 0, %s94
      %s112 = sphi 0, %s112
      %s114 = sphi 0, %s112
      %s115 = sphi 0, %s114
      %s129 = sphi 0, %s115
      %s133 = sphi 0, %s133
      %s135 = sphi 0, %s133
      %s136 = sphi 0, %s135
      %s150 = sphi 0, %s136
      %s156 = sphi 0, %s158
      %s159 = sphi 0, %s156
      %s160 = sphi 0, %s159
      %s176 = sphi 0, %s160
    $region4: #{tpu_custom_call.1} parent=1 // loop_header_branch
      %18 = sbr.rel (%p16) target = $region8
    $region5: #{tpu_custom_call.1} parent=1 // loop_body
      %s20 = ssub.s32 %s15, 1
      %s21 = ssub.s32 %s15, 2
      %s22 = sadd.s32 %s15, 1
      %s23 = ssub.s32 %s15, %s22
      %p24 = scmp.eq.s32.totalorder %s23, 0
      %s26 = sadd.s32 %s25, 1
      %s27 = scalar_select %p24, %s25, %s26
      %p30 = pneg %p24
      %p31 = scmp.eq.s32.totalorder %s15, 1
      %p32 = por %p30, %p31
      %p33 = scmp.ne.s32.totalorder %s25, %s28
      %p34 = scmp.eq.s32.totalorder %s15, 0
      %p35 = por %p33, %p34
      %p36 = scmp.ne.s32.totalorder %s25, %s28
      %p37 = scmp.eq.s32.totalorder %s20, 1
      %p38 = por %p36, %p37
      %p39 = scmp.ne.s32.totalorder %s28, %s29
      %p40 = scmp.eq.s32.totalorder %s20, 0
      %p41 = por %p39, %p40
      %p42 = scmp.ne.s32.totalorder %s28, %s29
      %p43 = scmp.eq.s32.totalorder %s21, 1
      %p44 = por %p42, %p43
      %p46 = scmp.ne.s32.totalorder %s29, %s45
      %p47 = scmp.eq.s32.totalorder %s21, 0
      %p48 = por %p46, %p47
      %s50 = sadd.s32 %s49, 1
      %p53 = scmp.eq.s32.totalorder %s15, 1
      %p54 = scmp.ne.s32.totalorder %s49, %s51
      %p55 = scmp.eq.s32.totalorder %s15, 0
      %p56 = por %p54, %p55
      %p57 = scmp.ne.s32.totalorder %s49, %s51
      %p58 = scmp.eq.s32.totalorder %s20, 1
      %p59 = por %p57, %p58
      %p60 = scmp.ne.s32.totalorder %s51, %s52
      %p61 = scmp.eq.s32.totalorder %s20, 0
      %p62 = por %p60, %p61
      %p63 = scmp.ne.s32.totalorder %s51, %s52
      %p64 = scmp.eq.s32.totalorder %s21, 1
      %p65 = por %p63, %p64
      %p67 = scmp.ne.s32.totalorder %s52, %s66
      %p68 = scmp.eq.s32.totalorder %s21, 0
      %p69 = por %p67, %p68
      %s71 = sadd.s32 %s70, 1
      %p74 = scmp.eq.s32.totalorder %s15, 1
      %p75 = scmp.ne.s32.totalorder %s70, %s72
      %p76 = scmp.eq.s32.totalorder %s15, 0
      %p77 = por %p75, %p76
      %p78 = scmp.ne.s32.totalorder %s70, %s72
      %p79 = scmp.eq.s32.totalorder %s20, 1
      %p80 = por %p78, %p79
      %p81 = scmp.ne.s32.totalorder %s72, %s73
      %p82 = scmp.eq.s32.totalorder %s20, 0
      %p83 = por %p81, %p82
      %p84 = scmp.ne.s32.totalorder %s72, %s73
      %p85 = scmp.eq.s32.totalorder %s21, 1
      %p86 = por %p84, %p85
      %p88 = scmp.ne.s32.totalorder %s73, %s87
      %p89 = scmp.eq.s32.totalorder %s21, 0
      %p90 = por %p88, %p89
      %s92 = sadd.s32 %s91, 1
      %p95 = scmp.eq.s32.totalorder %s15, 1
      %p96 = scmp.ne.s32.totalorder %s91, %s93
      %p97 = scmp.eq.s32.totalorder %s15, 0
      %p98 = por %p96, %p97
      %p99 = scmp.ne.s32.totalorder %s91, %s93
      %p100 = scmp.eq.s32.totalorder %s20, 1
      %p101 = por %p99, %p100
      %p102 = scmp.ne.s32.totalorder %s93, %s94
      %p103 = scmp.eq.s32.totalorder %s20, 0
      %p104 = por %p102, %p103
      %p105 = scmp.ne.s32.totalorder %s93, %s94
      %p106 = scmp.eq.s32.totalorder %s21, 1
      %p107 = por %p105, %p106
      %p109 = scmp.ne.s32.totalorder %s94, %s108
      %p110 = scmp.eq.s32.totalorder %s21, 0
      %p111 = por %p109, %p110
      %s113 = sadd.s32 %s112, 1
      %p116 = scmp.eq.s32.totalorder %s15, 1
      %p117 = scmp.ne.s32.totalorder %s112, %s114
      %p118 = scmp.eq.s32.totalorder %s15, 0
      %p119 = por %p117, %p118
      %p120 = scmp.ne.s32.totalorder %s112, %s114
      %p121 = scmp.eq.s32.totalorder %s20, 1
      %p122 = por %p120, %p121
      %p123 = scmp.ne.s32.totalorder %s114, %s115
      %p124 = scmp.eq.s32.totalorder %s20, 0
      %p125 = por %p123, %p124
      %p126 = scmp.ne.s32.totalorder %s114, %s115
      %p127 = scmp.eq.s32.totalorder %s21, 1
      %p128 = por %p126, %p127
      %p130 = scmp.ne.s32.totalorder %s115, %s129
      %p131 = scmp.eq.s32.totalorder %s21, 0
      %p132 = por %p130, %p131
      %s134 = sadd.s32 %s133, 1
      %p137 = scmp.eq.s32.totalorder %s15, 1
      %p138 = scmp.ne.s32.totalorder %s133, %s135
      %p139 = scmp.eq.s32.totalorder %s15, 0
      %p140 = por %p138, %p139
      %p141 = scmp.ne.s32.totalorder %s133, %s135
      %p142 = scmp.eq.s32.totalorder %s20, 1
      %p143 = por %p141, %p142
      %p144 = scmp.ne.s32.totalorder %s135, %s136
      %p145 = scmp.eq.s32.totalorder %s20, 0
      %p146 = por %p144, %p145
      %p147 = scmp.ne.s32.totalorder %s135, %s136
      %p148 = scmp.eq.s32.totalorder %s21, 1
      %p149 = por %p147, %p148
      %p151 = scmp.ne.s32.totalorder %s136, %s150
      %p152 = scmp.eq.s32.totalorder %s21, 0
      %p153 = por %p151, %p152
      %s154 = ssub.s32 %s15, %s22
      %p155 = scmp.eq.s32.totalorder %s154, 0
      %s157 = sadd.s32 %s156, 1
      %s158 = scalar_select %p155, %s156, %s157
      %p161 = pneg %p155
      %p162 = scmp.eq.s32.totalorder %s15, 1
      %p163 = por %p161, %p162
      %p164 = scmp.ne.s32.totalorder %s156, %s159
      %p165 = scmp.eq.s32.totalorder %s15, 0
      %p166 = por %p164, %p165
      %p167 = scmp.ne.s32.totalorder %s156, %s159
      %p168 = scmp.eq.s32.totalorder %s20, 1
      %p169 = por %p167, %p168
      %p170 = scmp.ne.s32.totalorder %s159, %s160
      %p171 = scmp.eq.s32.totalorder %s20, 0
      %p172 = por %p170, %p171
      %p173 = scmp.ne.s32.totalorder %s159, %s160
      %p174 = scmp.eq.s32.totalorder %s21, 1
      %p175 = por %p173, %p174
      %p177 = scmp.ne.s32.totalorder %s160, %s176
      %p178 = scmp.eq.s32.totalorder %s21, 0
      %p179 = por %p177, %p178
      %p180 = scmp.le.s32.totalorder 1, %s15
      %p181 = scmp.lt.s32.totalorder %s15, 3
      %p182 = pnand %p180, %p181
      %p183 = pneg %p182
      // Predicated region
      $region9: #{tpu_custom_call.1} parent=5 // pred_check
        _
      $region10: #{tpu_custom_call.1} parent=5 // pred_check_branch
        %185 = sbr.rel (%p182) target = $region12
      $region11: #{tpu_custom_call.1} parent=5 // pred_region
        %s186 = ssub.s32 %s15, 1
        // Predicated region
        $region13: #{tpu_custom_call.1} parent=11 // pred_check
          %p187 = pneg %p62
        $region14: #{tpu_custom_call.1} parent=11 // pred_check_branch
          %189 = sbr.rel (%p187) target = $region16
        $region15: #{tpu_custom_call.1} parent=11 // pred_region
          _
        $region16: #{tpu_custom_call.1} parent=11 // pred_fallthru
          _
        // Predicated region
        $region17: #{tpu_custom_call.1} parent=11 // pred_check
          %p190 = pneg %p83
        $region18: #{tpu_custom_call.1} parent=11 // pred_check_branch
          %192 = sbr.rel (%p190) target = $region20
        $region19: #{tpu_custom_call.1} parent=11 // pred_region
          _
        $region20: #{tpu_custom_call.1} parent=11 // pred_fallthru
          _
        // Predicated region
        $region21: #{tpu_custom_call.1} parent=11 // pred_check
          %p193 = pneg %p104
        $region22: #{tpu_custom_call.1} parent=11 // pred_check_branch
          %195 = sbr.rel (%p193) target = $region24
        $region23: #{tpu_custom_call.1} parent=11 // pred_region
          _
        $region24: #{tpu_custom_call.1} parent=11 // pred_fallthru
          _
        // Predicated region
        $region25: #{tpu_custom_call.1} parent=11 // pred_check
          %p196 = pneg %p125
        $region26: #{tpu_custom_call.1} parent=11 // pred_check_branch
          %198 = sbr.rel (%p196) target = $region28
        $region27: #{tpu_custom_call.1} parent=11 // pred_region
          _
        $region28: #{tpu_custom_call.1} parent=11 // pred_fallthru
          _
        // Predicated region
        $region29: #{tpu_custom_call.1} parent=11 // pred_check
          %p199 = pneg %p146
        $region30: #{tpu_custom_call.1} parent=11 // pred_check_branch
          %201 = sbr.rel (%p199) target = $region32
        $region31: #{tpu_custom_call.1} parent=11 // pred_region
          _
        $region32: #{tpu_custom_call.1} parent=11 // pred_fallthru
          _
      $region12: #{tpu_custom_call.1} parent=5 // pred_fallthru
        _
      %p202 = scmp.lt.s32.totalorder %s15, 2
      // Predicated region
      $region33: #{tpu_custom_call.1} parent=5 // pred_check
        %p203 = pneg %p202
      $region34: #{tpu_custom_call.1} parent=5 // pred_check_branch
        %205 = sbr.rel (%p203) target = $region36
      $region35: #{tpu_custom_call.1} parent=5 // pred_region
        // Predicated region
        $region37: #{tpu_custom_call.1} parent=35 // pred_check
          %p206 = pneg %p35
        $region38: #{tpu_custom_call.1} parent=35 // pred_check_branch
          %208 = sbr.rel (%p206) target = $region40
        $region39: #{tpu_custom_call.1} parent=35 // pred_region
          %s209 = smul.u32 4, %s15
          %p210 = scmp.lt.s32.totalorder %s209, 7
          %s211 = scalar_select %p210, %s209, 7
          %s212 = smul.addr %s211, 2
          %s213 = scalar_lea.vmem %s0, %s212
          %s214 = smul.u32 4, %s15
        $region40: #{tpu_custom_call.1} parent=35 // pred_fallthru
          _
      $region36: #{tpu_custom_call.1} parent=5 // pred_fallthru
        _
      %p215 = scmp.le.s32.totalorder 1, %s15
      %p216 = scmp.lt.s32.totalorder %s15, 3
      %p217 = pnand %p215, %p216
      %p218 = pneg %p217
      // Predicated region
      $region41: #{tpu_custom_call.1} parent=5 // pred_check
        _
      $region42: #{tpu_custom_call.1} parent=5 // pred_check_branch
        %220 = sbr.rel (%p217) target = $region44
      $region43: #{tpu_custom_call.1} parent=5 // pred_region
        %s221 = ssub.s32 %s15, 1
        %s222 = smul.u32 4, %s20
        %p223 = scmp.lt.s32.totalorder %s222, 7
        %s224 = scalar_select %p223, %s222, 7
        %s225 = smul.addr %s224, 2
        %s226 = scalar_lea.vmem %s0, %s225
        %p227 = pneg %p41
        %p228 = pneg %p38
        %p229 = pneg %p62
        %p230 = pneg %p59
        %p231 = pneg %p83
        %p232 = pneg %p80
        %p233 = pneg %p104
        %p234 = pneg %p101
        %p235 = pneg %p125
        %p236 = pneg %p122
        %p237 = pneg %p146
        %p238 = pneg %p143
        %p239 = pneg %p172
        %p240 = pneg %p169
        %s241 = sand.u32 %s159, 1
        %s242 = scalar_lea.sflag [#allocation3], %s241
        %s243 = sand.u32 %s159, 1
        %s244 = smul.addr %s243, 32
        %s245 = scalar_lea.vmem [#allocation2], %s244
        %s246 = smul.u32 4, %s20
        %p247 = scmp.lt.s32.totalorder %s246, 7
        %s248 = scalar_select %p247, %s246, 7
        %s249 = smul.addr %s248, 2
        %s250 = scalar_lea.vmem %s0, %s249
        %s251 = smul.u32 4, %s20
        %s252 = smul.u32 4, %s20
        %v254 = vld [vmem:[%s250] sm:$0x3]
        %v255 = vld [vmem:[%s1] sm:$0xf]
        %v256 = vld [vmem:[%s1 + $0x4] sm:$0xf]
        %v257 = vld [vmem:[%s1 + $0x8] sm:$0xf]
        %v258 = vld [vmem:[%s1 + $0xc] sm:$0xf]
        %v263 = vunpack.c.l.b16 %v255
        %v264 = vunpack.c.l.b16 %v256
        %v265 = vunpack.c.l.b16 %v257
        %v266 = vunpack.c.l.b16 %v258
        %v267 = vpack.c.b16 %v264, %v263
        %v268 = vpack.c.b16 %v266, %v265
        %vm269 = vcmask 31744
        %v271 = vsel %vm269, %v267, 0
        %v274 = vsel %vm269, %v268, 0
        %vm276 = vcmask 1041408
        %v278 = vsel %vm276, %v254, 0
        %280 = vmatprep.subr.bf16.mxu0 0
        %281 = vmatpush1.bf16.msra.mxu0 %v278
        %282 = vmatprep.subr.bf16.mxu0 0
        %283 = vmatpush1.bf16.msra.mxu0 0
        %284 = vmatprep.subr.bf16.mxu0 0
        %285 = vmatpush1.bf16.msra.mxu0 0
        %286 = vmatprep.subr.bf16.mxu0 0
        %287 = vmatpush1.bf16.msra.mxu0 0
        %288 = vmatprep.subr.bf16.mxu0 0
        %289 = vmatpush1.bf16.msra.mxu0 0
        %290 = vmatprep.subr.bf16.mxu0 0
        %291 = vmatpush1.bf16.msra.mxu0 0
        %292 = vmatprep.subr.bf16.mxu0 0
        %293 = vmatpush1.bf16.msra.mxu0 0
        %294 = vmatprep.subr.bf16.mxu0 0
        %295 = vmatpush1.bf16.msra.mxu0 0
        %296 = vmatprep.subr.bf16.mxu0 0
        %297 = vmatpush1.bf16.msra.mxu0 0
        %298 = vmatprep.subr.bf16.mxu0 0
        %299 = vmatpush1.bf16.msra.mxu0 0
        %300 = vmatprep.subr.bf16.mxu0 0
        %301 = vmatpush1.bf16.msra.mxu0 0
        %302 = vmatprep.subr.bf16.mxu0 0
        %303 = vmatpush1.bf16.msra.mxu0 0
        %304 = vmatprep.subr.bf16.mxu0 0
        %305 = vmatpush1.bf16.msra.mxu0 0
        %306 = vmatprep.subr.bf16.mxu0 0
        %307 = vmatpush1.bf16.msra.mxu0 0
        %308 = vmatprep.subr.bf16.mxu0 0
        %309 = vmatpush1.bf16.msra.mxu0 0
        %310 = vmatprep.subr.bf16.mxu0 0
        %311 = vmatpush1.bf16.msra.mxu0 0
        %312 = vmatprep.mubr.bf16.mxu0 0
        %313 = vmatmul.mubr.bf16.gmra.mrb[0].mxu0 %v271
        %v314 = vpop.f32.mrb[0].mxu0
        %v315 = vadd.f32 0.0, %v314
        %v316 = vpop.f32.mrb[0].mxu0
        %v317 = vpop.f32.mrb[0].mxu0
        %v318 = vadd.f32 0.0, %v317
        %v319 = vpop.f32.mrb[0].mxu0
        %320 = vmatprep.mubr.bf16.mxu0 0
        %321 = vmatmul.mubr.bf16.gmra.mrb[0].mxu0 %v274
        %v322 = vpop.f32.mrb[0].mxu0
        %v323 = vadd.f32 0.0, %v322
        %v324 = vpop.f32.mrb[0].mxu0
        %v325 = vpop.f32.mrb[0].mxu0
        %v326 = vadd.f32 0.0, %v325
        %v327 = vpop.f32.mrb[0].mxu0
        %328 = vdwg.mxu0
        %330 = vrot.lane.b32.xlu0 %v315, 4
        %v331 = vpop.permute.xlu0 %330
        %v333 = vsel %vm269, 0.0, %v331
        %v334 = vadd.f32 %v333, 0.0
        %336 = vrot.lane.b32.xlu0 %v318, 2
        %v337 = vpop.permute.xlu0 %336
        %vm339 = vcmask 15360
        %v340 = vsel %vm339, 0.0, %v337
        %v341 = vadd.f32 %v334, %v340
        %v342 = vadd.f32 %v341, %v323
        %v343 = vld [vmem:[%s2] sm:$0xff]
        %345 = vset.pattern.permute.xlu0 0
        %346 = vperm.xlu0 %345, %v343
        %v347 = vpop.permute.xlu0 %346
        %v349 = vadd.f32 %v342, %v347
        %v350 = vmax.f32 %v349, 0.0
        %v351 = vpack.c.bf16 %v350, %v350
        %v352 = vld [vmem:[%s5] sm:$0xff]
        %354 = vset.pattern.permute.xlu0 0
        %355 = vperm.xlu0 %354, %v352
        %v356 = vpop.permute.xlu0 %355
        %v358 = vadd.f32 %v326, %v356
        %v359 = vld [vmem:[%s3] sm:$0xf]
        %v360 = vld [vmem:[%s3 + $0x4] sm:$0xf]
        %v361 = vld [vmem:[%s3 + $0x8] sm:$0xf]
        %v365 = vunpack.c.l.b16 %v359
        %v366 = vunpack.c.l.b16 %v360
        %v367 = vunpack.c.l.b16 %v361
        %v368 = vpack.c.b16 %v366, %v365
        %v369 = vpack.c.b16 %v367, %v367
        %vm370 = vcmask 64512
        %v372 = vsel %vm370, %v368, 0
        %v375 = vsel %vm370, %v369, 0
        %vm377 = vcmask 1043456
        %v379 = vsel %vm377, %v351, 0
        %381 = vmatprep.subr.bf16.mxu0 0
        %382 = vmatpush1.bf16.msra.mxu0 %v379
        %383 = vmatprep.subr.bf16.mxu0 0
        %384 = vmatpush1.bf16.msra.mxu0 0
        %385 = vmatprep.subr.bf16.mxu0 0
        %386 = vmatpush1.bf16.msra.mxu0 0
        %387 = vmatprep.subr.bf16.mxu0 0
        %388 = vmatpush1.bf16.msra.mxu0 0
        %389 = vmatprep.subr.bf16.mxu0 0
        %390 = vmatpush1.bf16.msra.mxu0 0
        %391 = vmatprep.subr.bf16.mxu0 0
        %392 = vmatpush1.bf16.msra.mxu0 0
        %393 = vmatprep.subr.bf16.mxu0 0
        %394 = vmatpush1.bf16.msra.mxu0 0
        %395 = vmatprep.subr.bf16.mxu0 0
        %396 = vmatpush1.bf16.msra.mxu0 0
        %397 = vmatprep.subr.bf16.mxu0 0
        %398 = vmatpush1.bf16.msra.mxu0 0
        %399 = vmatprep.subr.bf16.mxu0 0
        %400 = vmatpush1.bf16.msra.mxu0 0
        %401 = vmatprep.subr.bf16.mxu0 0
        %402 = vmatpush1.bf16.msra.mxu0 0
        %403 = vmatprep.subr.bf16.mxu0 0
        %404 = vmatpush1.bf16.msra.mxu0 0
        %405 = vmatprep.subr.bf16.mxu0 0
        %406 = vmatpush1.bf16.msra.mxu0 0
        %407 = vmatprep.subr.bf16.mxu0 0
        %408 = vmatpush1.bf16.msra.mxu0 0
        %409 = vmatprep.subr.bf16.mxu0 0
        %410 = vmatpush1.bf16.msra.mxu0 0
        %411 = vmatprep.subr.bf16.mxu0 0
        %412 = vmatpush1.bf16.msra.mxu0 0
        %413 = vmatprep.mubr.bf16.mxu0 0
        %414 = vmatmul.mubr.bf16.gmra.mrb[0].mxu0 %v372
        %v415 = vpop.f32.mrb[0].mxu0
        %v416 = vadd.f32 0.0, %v415
        %v417 = vpop.f32.mrb[0].mxu0
        %v418 = vpop.f32.mrb[0].mxu0
        %v419 = vadd.f32 0.0, %v418
        %v420 = vpop.f32.mrb[0].mxu0
        %421 = vmatprep.mubr.bf16.mxu0 0
        %422 = vmatmul.mubr.bf16.gmra.mrb[0].mxu0 %v375
        %v423 = vpop.f32.mrb[0].mxu0
        %v424 = vadd.f32 0.0, %v423
        %v425 = vpop.f32.mrb[0].mxu0
        %v426 = vpop.f32.mrb[0].mxu0
        %v427 = vpop.f32.mrb[0].mxu0
        %428 = vdwg.mxu0
        %430 = vrot.lane.b32.xlu0 %v416, 4
        %v431 = vpop.permute.xlu0 %430
        %v433 = vsel %vm269, 0.0, %v431
        %v434 = vadd.f32 %v433, 0.0
        %436 = vrot.lane.b32.xlu0 %v419, 2
        %v437 = vpop.permute.xlu0 %436
        %v439 = vsel %vm339, 0.0, %v437
        %v440 = vadd.f32 %v434, %v439
        %v441 = vadd.f32 %v440, %v424
        %v442 = vld [vmem:[%s4] sm:$0xff]
        %444 = vset.pattern.permute.xlu0 0
        %445 = vperm.xlu0 %444, %v442
        %v446 = vpop.permute.xlu0 %445
        %v448 = vadd.f32 %v441, %v446
        %v449 = vmax.f32 %v448, 0.0
        %v450 = vadd.f32 %v449, %v358
        %v451 = vmax.f32 %v450, 0.0
        %452 = vst [vmem:[%s245] sm:$0xff] %v451
        %s453 = scalar_lea.vmem %s250, 2
        %v454 = vld [vmem:[%s453] sm:$0x3]
        %v455 = vld [vmem:[%s1] sm:$0xf]
        %v456 = vld [vmem:[%s1 + $0x4] sm:$0xf]
        %v457 = vld [vmem:[%s1 + $0x8] sm:$0xf]
        %v458 = vld [vmem:[%s1 + $0xc] sm:$0xf]
        %v463 = vunpack.c.l.b16 %v455
        %v464 = vunpack.c.l.b16 %v456
        %v465 = vunpack.c.l.b16 %v457
        %v466 = vunpack.c.l.b16 %v458
        %v467 = vpack.c.b16 %v464, %v463
        %v468 = vpack.c.b16 %v466, %v465
        %v470 = vsel %vm269, %v467, 0
        %v473 = vsel %vm269, %v468, 0
        %v476 = vsel %vm276, %v454, 0
        %478 = vmatprep.subr.bf16.mxu0 0
        %479 = vmatpush1.bf16.msra.mxu0 %v476
        %480 = vmatprep.subr.bf16.mxu0 0
        %481 = vmatpush1.bf16.msra.mxu0 0
        %482 = vmatprep.subr.bf16.mxu0 0
        %483 = vmatpush1.bf16.msra.mxu0 0
        %484 = vmatprep.subr.bf16.mxu0 0
        %485 = vmatpush1.bf16.msra.mxu0 0
        %486 = vmatprep.subr.bf16.mxu0 0
        %487 = vmatpush1.bf16.msra.mxu0 0
        %488 = vmatprep.subr.bf16.mxu0 0
        %489 = vmatpush1.bf16.msra.mxu0 0
        %490 = vmatprep.subr.bf16.mxu0 0
        %491 = vmatpush1.bf16.msra.mxu0 0
        %492 = vmatprep.subr.bf16.mxu0 0
        %493 = vmatpush1.bf16.msra.mxu0 0
        %494 = vmatprep.subr.bf16.mxu0 0
        %495 = vmatpush1.bf16.msra.mxu0 0
        %496 = vmatprep.subr.bf16.mxu0 0
        %497 = vmatpush1.bf16.msra.mxu0 0
        %498 = vmatprep.subr.bf16.mxu0 0
        %499 = vmatpush1.bf16.msra.mxu0 0
        %500 = vmatprep.subr.bf16.mxu0 0
        %501 = vmatpush1.bf16.msra.mxu0 0
        %502 = vmatprep.subr.bf16.mxu0 0
        %503 = vmatpush1.bf16.msra.mxu0 0
        %504 = vmatprep.subr.bf16.mxu0 0
        %505 = vmatpush1.bf16.msra.mxu0 0
        %506 = vmatprep.subr.bf16.mxu0 0
        %507 = vmatpush1.bf16.msra.mxu0 0
        %508 = vmatprep.subr.bf16.mxu0 0
        %509 = vmatpush1.bf16.msra.mxu0 0
        %510 = vmatprep.mubr.bf16.mxu0 0
        %511 = vmatmul.mubr.bf16.gmra.mrb[0].mxu0 %v470
        %v512 = vpop.f32.mrb[0].mxu0
        %v513 = vadd.f32 0.0, %v512
        %v514 = vpop.f32.mrb[0].mxu0
        %v515 = vpop.f32.mrb[0].mxu0
        %v516 = vadd.f32 0.0, %v515
        %v517 = vpop.f32.mrb[0].mxu0
        %518 = vmatprep.mubr.bf16.mxu0 0
        %519 = vmatmul.mubr.bf16.gmra.mrb[0].mxu0 %v473
        %v520 = vpop.f32.mrb[0].mxu0
        %v521 = vadd.f32 0.0, %v520
        %v522 = vpop.f32.mrb[0].mxu0
        %v523 = vpop.f32.mrb[0].mxu0
        %v524 = vadd.f32 0.0, %v523
        %v525 = vpop.f32.mrb[0].mxu0
        %526 = vdwg.mxu0
        %528 = vrot.lane.b32.xlu0 %v513, 4
        %v529 = vpop.permute.xlu0 %528
        %v531 = vsel %vm269, 0.0, %v529
        %v532 = vadd.f32 %v531, 0.0
        %534 = vrot.lane.b32.xlu0 %v516, 2
        %v535 = vpop.permute.xlu0 %534
        %v537 = vsel %vm339, 0.0, %v535
        %v538 = vadd.f32 %v532, %v537
        %v539 = vadd.f32 %v538, %v521
        %v540 = vld [vmem:[%s2] sm:$0xff]
        %542 = vset.pattern.permute.xlu0 0
        %543 = vperm.xlu0 %542, %v540
        %v544 = vpop.permute.xlu0 %543
        %v546 = vadd.f32 %v539, %v544
        %v547 = vmax.f32 %v546, 0.0
        %v548 = vpack.c.bf16 %v547, %v547
        %v549 = vld [vmem:[%s5] sm:$0xff]
        %551 = vset.pattern.permute.xlu0 0
        %552 = vperm.xlu0 %551, %v549
        %v553 = vpop.permute.xlu0 %552
        %v555 = vadd.f32 %v524, %v553
        %v556 = vld [vmem:[%s3] sm:$0xf]
        %v557 = vld [vmem:[%s3 + $0x4] sm:$0xf]
        %v558 = vld [vmem:[%s3 + $0x8] sm:$0xf]
        %v562 = vunpack.c.l.b16 %v556
        %v563 = vunpack.c.l.b16 %v557
        %v564 = vunpack.c.l.b16 %v558
        %v565 = vpack.c.b16 %v563, %v562
        %v566 = vpack.c.b16 %v564, %v564
        %v568 = vsel %vm370, %v565, 0
        %v571 = vsel %vm370, %v566, 0
        %v574 = vsel %vm377, %v548, 0
        %576 = vmatprep.subr.bf16.mxu0 0
        %577 = vmatpush1.bf16.msra.mxu0 %v574
        %578 = vmatprep.subr.bf16.mxu0 0
        %579 = vmatpush1.bf16.msra.mxu0 0
        %580 = vmatprep.subr.bf16.mxu0 0
        %581 = vmatpush1.bf16.msra.mxu0 0
        %582 = vmatprep.subr.bf16.mxu0 0
        %583 = vmatpush1.bf16.msra.mxu0 0
        %584 = vmatprep.subr.bf16.mxu0 0
        %585 = vmatpush1.bf16.msra.mxu0 0
        %586 = vmatprep.subr.bf16.mxu0 0
        %587 = vmatpush1.bf16.msra.mxu0 0
        %588 = vmatprep.subr.bf16.mxu0 0
        %589 = vmatpush1.bf16.msra.mxu0 0
        %590 = vmatprep.subr.bf16.mxu0 0
        %591 = vmatpush1.bf16.msra.mxu0 0
        %592 = vmatprep.subr.bf16.mxu0 0
        %593 = vmatpush1.bf16.msra.mxu0 0
        %594 = vmatprep.subr.bf16.mxu0 0
        %595 = vmatpush1.bf16.msra.mxu0 0
        %596 = vmatprep.subr.bf16.mxu0 0
        %597 = vmatpush1.bf16.msra.mxu0 0
        %598 = vmatprep.subr.bf16.mxu0 0
        %599 = vmatpush1.bf16.msra.mxu0 0
        %600 = vmatprep.subr.bf16.mxu0 0
        %601 = vmatpush1.bf16.msra.mxu0 0
        %602 = vmatprep.subr.bf16.mxu0 0
        %603 = vmatpush1.bf16.msra.mxu0 0
        %604 = vmatprep.subr.bf16.mxu0 0
        %605 = vmatpush1.bf16.msra.mxu0 0
        %606 = vmatprep.subr.bf16.mxu0 0
        %607 = vmatpush1.bf16.msra.mxu0 0
        %608 = vmatprep.mubr.bf16.mxu0 0
        %609 = vmatmul.mubr.bf16.gmra.mrb[0].mxu0 %v568
        %v610 = vpop.f32.mrb[0].mxu0
        %v611 = vadd.f32 0.0, %v610
        %v612 = vpop.f32.mrb[0].mxu0
        %v613 = vpop.f32.mrb[0].mxu0
        %v614 = vadd.f32 0.0, %v613
        %v615 = vpop.f32.mrb[0].mxu0
        %616 = vmatprep.mubr.bf16.mxu0 0
        %617 = vmatmul.mubr.bf16.gmra.mrb[0].mxu0 %v571
        %v618 = vpop.f32.mrb[0].mxu0
        %v619 = vadd.f32 0.0, %v618
        %v620 = vpop.f32.mrb[0].mxu0
        %v621 = vpop.f32.mrb[0].mxu0
        %v622 = vpop.f32.mrb[0].mxu0
        %623 = vdwg.mxu0
        %625 = vrot.lane.b32.xlu0 %v611, 4
        %v626 = vpop.permute.xlu0 %625
        %v628 = vsel %vm269, 0.0, %v626
        %v629 = vadd.f32 %v628, 0.0
        %631 = vrot.lane.b32.xlu0 %v614, 2
        %v632 = vpop.permute.xlu0 %631
        %v634 = vsel %vm339, 0.0, %v632
        %v635 = vadd.f32 %v629, %v634
        %v636 = vadd.f32 %v635, %v619
        %v637 = vld [vmem:[%s4] sm:$0xff]
        %639 = vset.pattern.permute.xlu0 0
        %640 = vperm.xlu0 %639, %v637
        %v641 = vpop.permute.xlu0 %640
        %v643 = vadd.f32 %v636, %v641
        %v644 = vmax.f32 %v643, 0.0
        %v645 = vadd.f32 %v644, %v555
        %v646 = vmax.f32 %v645, 0.0
        %s647 = scalar_lea.vmem %s245, 8 [#allocation2]
        %648 = vst [vmem:[%s647] sm:$0xff] %v646
        %s649 = scalar_lea.vmem %s250, 4
        %v650 = vld [vmem:[%s649] sm:$0x3]
        %v651 = vld [vmem:[%s1] sm:$0xf]
        %v652 = vld [vmem:[%s1 + $0x4] sm:$0xf]
        %v653 = vld [vmem:[%s1 + $0x8] sm:$0xf]
        %v654 = vld [vmem:[%s1 + $0xc] sm:$0xf]
        %v659 = vunpack.c.l.b16 %v651
        %v660 = vunpack.c.l.b16 %v652
        %v661 = vunpack.c.l.b16 %v653
        %v662 = vunpack.c.l.b16 %v654
        %v663 = vpack.c.b16 %v660, %v659
        %v664 = vpack.c.b16 %v662, %v661
        %v666 = vsel %vm269, %v663, 0
        %v669 = vsel %vm269, %v664, 0
        %v672 = vsel %vm276, %v650, 0
        %674 = vmatprep.subr.bf16.mxu0 0
        %675 = vmatpush1.bf16.msra.mxu0 %v672
        %676 = vmatprep.subr.bf16.mxu0 0
        %677 = vmatpush1.bf16.msra.mxu0 0
        %678 = vmatprep.subr.bf16.mxu0 0
        %679 = vmatpush1.bf16.msra.mxu0 0
        %680 = vmatprep.subr.bf16.mxu0 0
        %681 = vmatpush1.bf16.msra.mxu0 0
        %682 = vmatprep.subr.bf16.mxu0 0
        %683 = vmatpush1.bf16.msra.mxu0 0
        %684 = vmatprep.subr.bf16.mxu0 0
        %685 = vmatpush1.bf16.msra.mxu0 0
        %686 = vmatprep.subr.bf16.mxu0 0
        %687 = vmatpush1.bf16.msra.mxu0 0
        %688 = vmatprep.subr.bf16.mxu0 0
        %689 = vmatpush1.bf16.msra.mxu0 0
        %690 = vmatprep.subr.bf16.mxu0 0
        %691 = vmatpush1.bf16.msra.mxu0 0
        %692 = vmatprep.subr.bf16.mxu0 0
        %693 = vmatpush1.bf16.msra.mxu0 0
        %694 = vmatprep.subr.bf16.mxu0 0
        %695 = vmatpush1.bf16.msra.mxu0 0
        %696 = vmatprep.subr.bf16.mxu0 0
        %697 = vmatpush1.bf16.msra.mxu0 0
        %698 = vmatprep.subr.bf16.mxu0 0
        %699 = vmatpush1.bf16.msra.mxu0 0
        %700 = vmatprep.subr.bf16.mxu0 0
        %701 = vmatpush1.bf16.msra.mxu0 0
        %702 = vmatprep.subr.bf16.mxu0 0
        %703 = vmatpush1.bf16.msra.mxu0 0
        %704 = vmatprep.subr.bf16.mxu0 0
        %705 = vmatpush1.bf16.msra.mxu0 0
        %706 = vmatprep.mubr.bf16.mxu0 0
        %707 = vmatmul.mubr.bf16.gmra.mrb[0].mxu0 %v666
        %v708 = vpop.f32.mrb[0].mxu0
        %v709 = vadd.f32 0.0, %v708
        %v710 = vpop.f32.mrb[0].mxu0
        %v711 = vpop.f32.mrb[0].mxu0
        %v712 = vadd.f32 0.0, %v711
        %v713 = vpop.f32.mrb[0].mxu0
        %714 = vmatprep.mubr.bf16.mxu0 0
        %715 = vmatmul.mubr.bf16.gmra.mrb[0].mxu0 %v669
        %v716 = vpop.f32.mrb[0].mxu0
        %v717 = vadd.f32 0.0, %v716
        %v718 = vpop.f32.mrb[0].mxu0
        %v719 = vpop.f32.mrb[0].mxu0
        %v720 = vadd.f32 0.0, %v719
        %v721 = vpop.f32.mrb[0].mxu0
        %722 = vdwg.mxu0
        %724 = vrot.lane.b32.xlu0 %v709, 4
        %v725 = vpop.permute.xlu0 %724
        %v727 = vsel %vm269, 0.0, %v725
        %v728 = vadd.f32 %v727, 0.0
        %730 = vrot.lane.b32.xlu0 %v712, 2
        %v731 = vpop.permute.xlu0 %730
        %v733 = vsel %vm339, 0.0, %v731
        %v734 = vadd.f32 %v728, %v733
        %v735 = vadd.f32 %v734, %v717
        %v736 = vld [vmem:[%s2] sm:$0xff]
        %738 = vset.pattern.permute.xlu0 0
        %739 = vperm.xlu0 %738, %v736
        %v740 = vpop.permute.xlu0 %739
        %v742 = vadd.f32 %v735, %v740
        %v743 = vmax.f32 %v742, 0.0
        %v744 = vpack.c.bf16 %v743, %v743
        %v745 = vld [vmem:[%s5] sm:$0xff]
        %747 = vset.pattern.permute.xlu0 0
        %748 = vperm.xlu0 %747, %v745
        %v749 = vpop.permute.xlu0 %748
        %v751 = vadd.f32 %v720, %v749
        %v752 = vld [vmem:[%s3] sm:$0xf]
        %v753 = vld [vmem:[%s3 + $0x4] sm:$0xf]
        %v754 = vld [vmem:[%s3 + $0x8] sm:$0xf]
        %v758 = vunpack.c.l.b16 %v752
        %v759 = vunpack.c.l.b16 %v753
        %v760 = vunpack.c.l.b16 %v754
        %v761 = vpack.c.b16 %v759, %v758
        %v762 = vpack.c.b16 %v760, %v760
        %v764 = vsel %vm370, %v761, 0
        %v767 = vsel %vm370, %v762, 0
        %v770 = vsel %vm377, %v744, 0
        %772 = vmatprep.subr.bf16.mxu0 0
        %773 = vmatpush1.bf16.msra.mxu0 %v770
        %774 = vmatprep.subr.bf16.mxu0 0
        %775 = vmatpush1.bf16.msra.mxu0 0
        %776 = vmatprep.subr.bf16.mxu0 0
        %777 = vmatpush1.bf16.msra.mxu0 0
        %778 = vmatprep.subr.bf16.mxu0 0
        %779 = vmatpush1.bf16.msra.mxu0 0
        %780 = vmatprep.subr.bf16.mxu0 0
        %781 = vmatpush1.bf16.msra.mxu0 0
        %782 = vmatprep.subr.bf16.mxu0 0
        %783 = vmatpush1.bf16.msra.mxu0 0
        %784 = vmatprep.subr.bf16.mxu0 0
        %785 = vmatpush1.bf16.msra.mxu0 0
        %786 = vmatprep.subr.bf16.mxu0 0
        %787 = vmatpush1.bf16.msra.mxu0 0
        %788 = vmatprep.subr.bf16.mxu0 0
        %789 = vmatpush1.bf16.msra.mxu0 0
        %790 = vmatprep.subr.bf16.mxu0 0
        %791 = vmatpush1.bf16.msra.mxu0 0
        %792 = vmatprep.subr.bf16.mxu0 0
        %793 = vmatpush1.bf16.msra.mxu0 0
        %794 = vmatprep.subr.bf16.mxu0 0
        %795 = vmatpush1.bf16.msra.mxu0 0
        %796 = vmatprep.subr.bf16.mxu0 0
        %797 = vmatpush1.bf16.msra.mxu0 0
        %798 = vmatprep.subr.bf16.mxu0 0
        %799 = vmatpush1.bf16.msra.mxu0 0
        %800 = vmatprep.subr.bf16.mxu0 0
        %801 = vmatpush1.bf16.msra.mxu0 0
        %802 = vmatprep.subr.bf16.mxu0 0
        %803 = vmatpush1.bf16.msra.mxu0 0
        %804 = vmatprep.mubr.bf16.mxu0 0
        %805 = vmatmul.mubr.bf16.gmra.mrb[0].mxu0 %v764
        %v806 = vpop.f32.mrb[0].mxu0
        %v807 = vadd.f32 0.0, %v806
        %v808 = vpop.f32.mrb[0].mxu0
        %v809 = vpop.f32.mrb[0].mxu0
        %v810 = vadd.f32 0.0, %v809
        %v811 = vpop.f32.mrb[0].mxu0
        %812 = vmatprep.mubr.bf16.mxu0 0
        %813 = vmatmul.mubr.bf16.gmra.mrb[0].mxu0 %v767
        %v814 = vpop.f32.mrb[0].mxu0
        %v815 = vadd.f32 0.0, %v814
        %v816 = vpop.f32.mrb[0].mxu0
        %v817 = vpop.f32.mrb[0].mxu0
        %v818 = vpop.f32.mrb[0].mxu0
        %819 = vdwg.mxu0
        %821 = vrot.lane.b32.xlu0 %v807, 4
        %v822 = vpop.permute.xlu0 %821
        %v824 = vsel %vm269, 0.0, %v822
        %v825 = vadd.f32 %v824, 0.0
        %827 = vrot.lane.b32.xlu0 %v810, 2
        %v828 = vpop.permute.xlu0 %827
        %v830 = vsel %vm339, 0.0, %v828
        %v831 = vadd.f32 %v825, %v830
        %v832 = vadd.f32 %v831, %v815
        %v833 = vld [vmem:[%s4] sm:$0xff]
        %835 = vset.pattern.permute.xlu0 0
        %836 = vperm.xlu0 %835, %v833
        %v837 = vpop.permute.xlu0 %836
        %v839 = vadd.f32 %v832, %v837
        %v840 = vmax.f32 %v839, 0.0
        %v841 = vadd.f32 %v840, %v751
        %v842 = vmax.f32 %v841, 0.0
        %s843 = scalar_lea.vmem %s245, 16 [#allocation2]
        %844 = vst [vmem:[%s843] sm:$0xff] %v842
        %s845 = scalar_lea.vmem %s250, 6
        %v846 = vld [vmem:[%s845] sm:$0x3]
        %v847 = vld [vmem:[%s1] sm:$0xf]
        %v848 = vld [vmem:[%s1 + $0x4] sm:$0xf]
        %v849 = vld [vmem:[%s1 + $0x8] sm:$0xf]
        %v850 = vld [vmem:[%s1 + $0xc] sm:$0xf]
        %v855 = vunpack.c.l.b16 %v847
        %v856 = vunpack.c.l.b16 %v848
        %v857 = vunpack.c.l.b16 %v849
        %v858 = vunpack.c.l.b16 %v850
        %v859 = vpack.c.b16 %v856, %v855
        %v860 = vpack.c.b16 %v858, %v857
        %v862 = vsel %vm269, %v859, 0
        %v865 = vsel %vm269, %v860, 0
        %v868 = vsel %vm276, %v846, 0
        %870 = vmatprep.subr.bf16.mxu0 0
        %871 = vmatpush1.bf16.msra.mxu0 %v868
        %872 = vmatprep.subr.bf16.mxu0 0
        %873 = vmatpush1.bf16.msra.mxu0 0
        %874 = vmatprep.subr.bf16.mxu0 0
        %875 = vmatpush1.bf16.msra.mxu0 0
        %876 = vmatprep.subr.bf16.mxu0 0
        %877 = vmatpush1.bf16.msra.mxu0 0
        %878 = vmatprep.subr.bf16.mxu0 0
        %879 = vmatpush1.bf16.msra.mxu0 0
        %880 = vmatprep.subr.bf16.mxu0 0
        %881 = vmatpush1.bf16.msra.mxu0 0
        %882 = vmatprep.subr.bf16.mxu0 0
        %883 = vmatpush1.bf16.msra.mxu0 0
        %884 = vmatprep.subr.bf16.mxu0 0
        %885 = vmatpush1.bf16.msra.mxu0 0
        %886 = vmatprep.subr.bf16.mxu0 0
        %887 = vmatpush1.bf16.msra.mxu0 0
        %888 = vmatprep.subr.bf16.mxu0 0
        %889 = vmatpush1.bf16.msra.mxu0 0
        %890 = vmatprep.subr.bf16.mxu0 0
        %891 = vmatpush1.bf16.msra.mxu0 0
        %892 = vmatprep.subr.bf16.mxu0 0
        %893 = vmatpush1.bf16.msra.mxu0 0
        %894 = vmatprep.subr.bf16.mxu0 0
        %895 = vmatpush1.bf16.msra.mxu0 0
        %896 = vmatprep.subr.bf16.mxu0 0
        %897 = vmatpush1.bf16.msra.mxu0 0
        %898 = vmatprep.subr.bf16.mxu0 0
        %899 = vmatpush1.bf16.msra.mxu0 0
        %900 = vmatprep.subr.bf16.mxu0 0
        %901 = vmatpush1.bf16.msra.mxu0 0
        %902 = vmatprep.mubr.bf16.mxu0 0
        %903 = vmatmul.mubr.bf16.gmra.mrb[0].mxu0 %v862
        %v904 = vpop.f32.mrb[0].mxu0
        %v905 = vadd.f32 0.0, %v904
        %v906 = vpop.f32.mrb[0].mxu0
        %v907 = vpop.f32.mrb[0].mxu0
        %v908 = vadd.f32 0.0, %v907
        %v909 = vpop.f32.mrb[0].mxu0
        %910 = vmatprep.mubr.bf16.mxu0 0
        %911 = vmatmul.mubr.bf16.gmra.mrb[0].mxu0 %v865
        %v912 = vpop.f32.mrb[0].mxu0
        %v913 = vadd.f32 0.0, %v912
        %v914 = vpop.f32.mrb[0].mxu0
        %v915 = vpop.f32.mrb[0].mxu0
        %v916 = vadd.f32 0.0, %v915
        %v917 = vpop.f32.mrb[0].mxu0
        %918 = vdwg.mxu0
        %920 = vrot.lane.b32.xlu0 %v905, 4
        %v921 = vpop.permute.xlu0 %920
        %v923 = vsel %vm269, 0.0, %v921
        %v924 = vadd.f32 %v923, 0.0
        %926 = vrot.lane.b32.xlu0 %v908, 2
        %v927 = vpop.permute.xlu0 %926
        %v929 = vsel %vm339, 0.0, %v927
        %v930 = vadd.f32 %v924, %v929
        %v931 = vadd.f32 %v930, %v913
        %v932 = vld [vmem:[%s2] sm:$0xff]
        %934 = vset.pattern.permute.xlu0 0
        %935 = vperm.xlu0 %934, %v932
        %v936 = vpop.permute.xlu0 %935
        %v938 = vadd.f32 %v931, %v936
        %v939 = vmax.f32 %v938, 0.0
        %v940 = vpack.c.bf16 %v939, %v939
        %v941 = vld [vmem:[%s5] sm:$0xff]
        %943 = vset.pattern.permute.xlu0 0
        %944 = vperm.xlu0 %943, %v941
        %v945 = vpop.permute.xlu0 %944
        %v947 = vadd.f32 %v916, %v945
        %v948 = vld [vmem:[%s3] sm:$0xf]
        %v949 = vld [vmem:[%s3 + $0x4] sm:$0xf]
        %v950 = vld [vmem:[%s3 + $0x8] sm:$0xf]
        %v954 = vunpack.c.l.b16 %v948
        %v955 = vunpack.c.l.b16 %v949
        %v956 = vunpack.c.l.b16 %v950
        %v957 = vpack.c.b16 %v955, %v954
        %v958 = vpack.c.b16 %v956, %v956
        %v960 = vsel %vm370, %v957, 0
        %v963 = vsel %vm370, %v958, 0
        %v966 = vsel %vm377, %v940, 0
        %968 = vmatprep.subr.bf16.mxu0 0
        %969 = vmatpush1.bf16.msra.mxu0 %v966
        %970 = vmatprep.subr.bf16.mxu0 0
        %971 = vmatpush1.bf16.msra.mxu0 0
        %972 = vmatprep.subr.bf16.mxu0 0
        %973 = vmatpush1.bf16.msra.mxu0 0
        %974 = vmatprep.subr.bf16.mxu0 0
        %975 = vmatpush1.bf16.msra.mxu0 0
        %976 = vmatprep.subr.bf16.mxu0 0
        %977 = vmatpush1.bf16.msra.mxu0 0
        %978 = vmatprep.subr.bf16.mxu0 0
        %979 = vmatpush1.bf16.msra.mxu0 0
        %980 = vmatprep.subr.bf16.mxu0 0
        %981 = vmatpush1.bf16.msra.mxu0 0
        %982 = vmatprep.subr.bf16.mxu0 0
        %983 = vmatpush1.bf16.msra.mxu0 0
        %984 = vmatprep.subr.bf16.mxu0 0
        %985 = vmatpush1.bf16.msra.mxu0 0
        %986 = vmatprep.subr.bf16.mxu0 0
        %987 = vmatpush1.bf16.msra.mxu0 0
        %988 = vmatprep.subr.bf16.mxu0 0
        %989 = vmatpush1.bf16.msra.mxu0 0
        %990 = vmatprep.subr.bf16.mxu0 0
        %991 = vmatpush1.bf16.msra.mxu0 0
        %992 = vmatprep.subr.bf16.mxu0 0
        %993 = vmatpush1.bf16.msra.mxu0 0
        %994 = vmatprep.subr.bf16.mxu0 0
        %995 = vmatpush1.bf16.msra.mxu0 0
        %996 = vmatprep.subr.bf16.mxu0 0
        %997 = vmatpush1.bf16.msra.mxu0 0
        %998 = vmatprep.subr.bf16.mxu0 0
        %999 = vmatpush1.bf16.msra.mxu0 0
        %1000 = vmatprep.mubr.bf16.mxu0 0
        %1001 = vmatmul.mubr.bf16.gmra.mrb[0].mxu0 %v960
        %v1002 = vpop.f32.mrb[0].mxu0
        %v1003 = vadd.f32 0.0, %v1002
        %v1004 = vpop.f32.mrb[0].mxu0
        %v1005 = vpop.f32.mrb[0].mxu0
        %v1006 = vadd.f32 0.0, %v1005
        %v1007 = vpop.f32.mrb[0].mxu0
        %1008 = vmatprep.mubr.bf16.mxu0 0
        %1009 = vmatmul.mubr.bf16.gmra.mrb[0].mxu0 %v963
        %v1010 = vpop.f32.mrb[0].mxu0
        %v1011 = vadd.f32 0.0, %v1010
        %v1012 = vpop.f32.mrb[0].mxu0
        %v1013 = vpop.f32.mrb[0].mxu0
        %v1014 = vpop.f32.mrb[0].mxu0
        %1015 = vdwg.mxu0
        %1017 = vrot.lane.b32.xlu0 %v1003, 4
        %v1018 = vpop.permute.xlu0 %1017
        %v1020 = vsel %vm269, 0.0, %v1018
        %v1021 = vadd.f32 %v1020, 0.0
        %1023 = vrot.lane.b32.xlu0 %v1006, 2
        %v1024 = vpop.permute.xlu0 %1023
        %v1026 = vsel %vm339, 0.0, %v1024
        %v1027 = vadd.f32 %v1021, %v1026
        %v1028 = vadd.f32 %v1027, %v1011
        %v1029 = vld [vmem:[%s4] sm:$0xff]
        %1031 = vset.pattern.permute.xlu0 0
        %1032 = vperm.xlu0 %1031, %v1029
        %v1033 = vpop.permute.xlu0 %1032
        %v1035 = vadd.f32 %v1028, %v1033
        %v1036 = vmax.f32 %v1035, 0.0
        %v1037 = vadd.f32 %v1036, %v947
        %v1038 = vmax.f32 %v1037, 0.0
        %s1039 = scalar_lea.vmem %s245, 24 [#allocation2]
        %1040 = vst [vmem:[%s1039] sm:$0xff] %v1038
        %s1041 = sand.u32 %s159, 1
        %s1042 = scalar_lea.sflag [#allocation3], %s1041
        %s1043 = sand.u32 %s159, 1
        %s1044 = smul.addr %s1043, 32
        %s1045 = scalar_lea.vmem [#allocation2], %s1044
        // Predicated region
        $region45: #{tpu_custom_call.1} parent=43 // pred_check
          %p1046 = pneg %p169
        $region46: #{tpu_custom_call.1} parent=43 // pred_check_branch
          %1048 = sbr.rel (%p1046) target = $region48
        $region47: #{tpu_custom_call.1} parent=43 // pred_region
          %s1049 = smul.u32 4, %s20
          %s1051 = ssub.s32 512, 512
          %1052 = vsyncadd %s1042, %s1051
          %s1053 = smul.addr %s1049, 128
          %s1054 = scalar_lea.hbm %s6, %s1053
          %s1055 = sshll.u32 %s1045, 4
          %s1056 = int_to_ptr.vmem [resolvable:$true] %s1055
          %1061 = dma.vmem_to_hbm [thread:$0]  %s1056, 512, %s1054, %s1042, 128, 128, 8
        $region48: #{tpu_custom_call.1} parent=43 // pred_fallthru
          _
      $region44: #{tpu_custom_call.1} parent=5 // pred_fallthru
        _
      %p1062 = scmp.le.s32.totalorder 2, %s15
      // Predicated region
      $region49: #{tpu_custom_call.1} parent=5 // pred_check
        %p1063 = pneg %p1062
      $region50: #{tpu_custom_call.1} parent=5 // pred_check_branch
        %1065 = sbr.rel (%p1063) target = $region52
      $region51: #{tpu_custom_call.1} parent=5 // pred_region
        %s1066 = ssub.s32 %s15, 2
        // Predicated region
        $region53: #{tpu_custom_call.1} parent=51 // pred_check
          %p1067 = pneg %p175
        $region54: #{tpu_custom_call.1} parent=51 // pred_check_branch
          %1069 = sbr.rel (%p1067) target = $region56
        $region55: #{tpu_custom_call.1} parent=51 // pred_region
          %s1070 = sand.u32 %s160, 1
          %s1071 = scalar_lea.sflag [#allocation3], %s1070
          %s1072 = sand.u32 %s160, 1
          %s1073 = smul.addr %s1072, 32
          %s1074 = scalar_lea.vmem [#allocation2], %s1073
          %1075 = dma.done %s1071, 512
        $region56: #{tpu_custom_call.1} parent=51 // pred_fallthru
          _
      $region52: #{tpu_custom_call.1} parent=5 // pred_fallthru
        _
    $region6: #{tpu_custom_call.1} parent=1 // loop_footer
      %s19 = sadd.s32 1, %s15
    $region7: #{tpu_custom_call.1} parent=1 // loop_footer_branch
      %14 = sbr.rel target = $region3
    $region8: #{tpu_custom_call.1} parent=1 // loop_exit
      _
    %1076 = vsyncpa [#allocation3], 1
    %s1077 = scalar_lea.sflag [#allocation3], 1
    %1078 = vsyncpa %s1077, 1

</llo_original>
